<compile_context>
chip_gen: v7x
topology: tpu7x:2x2x1
jax: 0.10.0
libtpu: 0.0.40
codegen_flags: <defaults>
</compile_context>

<pallas_src>
import numpy as np
import jax
import jax.numpy as jnp
from jax.experimental import pallas as pl
from jax.experimental.pallas import tpu as pltpu


def _build_border_masks(H, W):
    """(9, H*W) 0/1 masks, one per 3x3 tap (dh, dw); zero where that tap's
    source pixel falls in the 1-pixel zero-padding ring (incl. lane wraps)."""
    hh, ww = np.meshgrid(np.arange(H), np.arange(W), indexing="ij")
    masks = np.ones((9, H * W), np.float32)
    for dh in range(3):
        for dw in range(3):
            ok = np.ones((H, W), bool)
            if dh == 0:
                ok &= hh >= 1
            if dh == 2:
                ok &= hh <= H - 2
            if dw == 0:
                ok &= ww >= 1
            if dw == 2:
                ok &= ww <= W - 2
            masks[3 * dh + dw] = ok.reshape(-1)
    return masks


def fire_pallas(x_nchw, params, *, compute_dtype=jnp.float32,
                vmem_limit_bytes=None):
    """x_nchw: (N, Cin, H, W) f32 -> (N, E1+E3, H, W) f32 (== the torch module)."""
    ws, bs, w1, b1, w3, b3 = params
    N, Cin, H, W = x_nchw.shape
    Cs = ws.shape[1]
    E1 = w1.shape[1]
    E3 = w3.shape[3]
    Ecat = E1 + E3
    HW = H * W

    # Kernel-layout weights: one-time host-side transposes of tiny arrays.
    ws_t = jnp.transpose(ws, (1, 0)).astype(compute_dtype)              # (Cs, Cin)
    w1_t = jnp.transpose(w1, (1, 0)).astype(compute_dtype)              # (E1, Cs)
    w3_t = jnp.transpose(w3, (0, 1, 3, 2)).reshape(9, E3, Cs).astype(compute_dtype)
    bs_c = bs.reshape(Cs, 1).astype(jnp.float32)                        # f32 epilogue
    b1_c = b1.reshape(E1, 1).astype(jnp.float32)
    b3_c = b3.reshape(E3, 1).astype(jnp.float32)
    masks = jnp.asarray(_build_border_masks(H, W), compute_dtype)       # (9, HW)

    # NCHW with H*W folded onto the lane axis: a free row-major reshape, NOT a
    # transpose.  (bf16 compute additionally halves the input DMA.)
    x3 = x_nchw.reshape(N, Cin, HW).astype(compute_dtype)

    def kernel(x_ref, ws_ref, bs_ref, w1_ref, b1_ref, w3_ref, b3_ref,
               m_ref, out_ref):
        # x_ref  : (1, Cin, HW)   channels on sublanes, pixels on lanes
        # ws_ref : (Cs, Cin)      bs_ref: (Cs, 1)
        # w1_ref : (E1, Cs)       b1_ref: (E1, 1)
        # w3_ref : (9, E3, Cs)    b3_ref: (E3, 1)   taps in (dh, dw) order
        # m_ref  : (9, HW)        0/1 border masks per tap
        # out_ref: (1, E1+E3, HW) fused [e1 ; e3] output (NCHW, HW on lanes)
        x = x_ref[0]                                               # (Cin, HW)

        # ---- squeeze: 1x1 conv + ReLU ----
        s = jnp.dot(ws_ref[...], x, preferred_element_type=jnp.float32)
        s = jnp.maximum(s + bs_ref[...], 0.0)                      # (Cs, HW) f32
        s_c = s.astype(ws_ref.dtype)

        # ---- expand1x1: 1x1 conv + ReLU -> first E1 channel rows ----
        e1 = jnp.dot(w1_ref[...], s_c, preferred_element_type=jnp.float32)
        e1 = jnp.maximum(e1 + b1_ref[...], 0.0)                    # (E1, HW)
        out_ref[0, :E1, :] = e1.astype(out_ref.dtype)

        # ---- expand3x3 (padding=1) + ReLU -> last E3 channel rows ----
        # Tap (dh, dw) needs s at flat index m + (dh-1)*W + (dw-1); in the
        # flattened lane layout that is a static lane roll (XLU).  Lanes whose
        # true source lies in the padding ring (incl. roll wrap-around) are
        # zeroed by the precomputed mask before the matmul.
        acc = None
        for dh in range(3):
            for dw in range(3):
                k = 3 * dh + dw
                off = (dh - 1) * W + (dw - 1)
                if off == 0:
                    tap = s_c
                else:
                    tap = pltpu.roll(s_c, shift=(-off) % HW, axis=1)
                if k != 4:                       # centre tap needs no mask
                    tap = tap * m_ref[k:k + 1, :]
                contrib = jnp.dot(w3_ref[k], tap,
                                  preferred_element_type=jnp.float32)
                acc = contrib if acc is None else acc + contrib    # (E3, HW)
        e3 = jnp.maximum(acc + b3_ref[...], 0.0)
        out_ref[0, E1:, :] = e3.astype(out_ref.dtype)

    def _full(a):
        zeros = (0,) * a.ndim
        return pl.BlockSpec(a.shape, lambda n, _z=zeros: _z)

    itemsize = jnp.dtype(compute_dtype).itemsize
    cost = pl.CostEstimate(
        flops=int(2 * N * HW * (Cin * Cs + Cs * E1 + 9 * Cs * E3)),
        transcendentals=0,
        bytes_accessed=int(
            x3.size * itemsize
            + (ws_t.size + w1_t.size + w3_t.size + masks.size) * itemsize
            + (bs_c.size + b1_c.size + b3_c.size) * 4
            + N * Ecat * HW * 4))

    out = pl.pallas_call(
        kernel,
        out_shape=jax.ShapeDtypeStruct((N, Ecat, HW), jnp.float32),
        grid_spec=pltpu.PrefetchScalarGridSpec(
            num_scalar_prefetch=0,
            grid=(N,),
            in_specs=[
                pl.BlockSpec((1, Cin, HW), lambda n: (n, 0, 0)),
                _full(ws_t), _full(bs_c),
                _full(w1_t), _full(b1_c),
                _full(w3_t), _full(b3_c),
                _full(masks),
            ],
            out_specs=pl.BlockSpec((1, Ecat, HW), lambda n: (n, 0, 0)),
        ),
        compiler_params=pltpu.CompilerParams(
            dimension_semantics=("parallel",),
            vmem_limit_bytes=vmem_limit_bytes),
        cost_estimate=cost,
    )(x3, ws_t, bs_c, w1_t, b1_c, w3_t, b3_c, masks)

    # (N, Ecat, HW) row-major == (N, Ecat, H, W): free reshape, already NCHW,
    # identical to torch.cat([expand1x1(...), expand3x3(...)], dim=1).
    return out.reshape(N, Ecat, H, W)


def fire_reference(x_nchw, params):
    """Pure-JAX reference using lax.conv_general_dilated (for validation)."""
    ws, bs, w1, b1, w3, b3 = params
    dn = jax.lax.conv_dimension_numbers(x_nchw.shape, (1, 1, 1, 1),
                                        ("NCHW", "OIHW", "NCHW"))

    def conv(x, w_oihw, b, padding):
        y = jax.lax.conv_general_dilated(x, w_oihw, (1, 1), padding,
                                         dimension_numbers=dn)
        return jnp.maximum(y + b.reshape(1, -1, 1, 1), 0.0)

    ws_oihw = jnp.transpose(ws, (1, 0)).reshape(ws.shape[1], ws.shape[0], 1, 1)
    w1_oihw = jnp.transpose(w1, (1, 0)).reshape(w1.shape[1], w1.shape[0], 1, 1)
    w3_oihw = jnp.transpose(w3, (3, 2, 0, 1))  # (3,3,Cs,E3) -> (E3,Cs,3,3)

    s = conv(x_nchw, ws_oihw, bs.reshape(-1), "VALID")
    e1 = conv(s, w1_oihw, b1.reshape(-1), "VALID")
    e3 = conv(s, w3_oihw, b3.reshape(-1), ((1, 1), (1, 1)))
    return jnp.concatenate([e1, e3], axis=1)


def make_params(key, inplanes, squeeze_planes, e1_planes, e3_planes):
    """Deterministic synthetic params:
       squeeze   weight (Cin, Cs),      bias (1, Cs)
       expand1x1 weight (Cs, E1),       bias (1, E1)
       expand3x3 weight (3, 3, Cs, E3), bias (1, E3)"""
    ks = jax.random.split(key, 6)
    ws = jax.random.normal(ks[0], (inplanes, squeeze_planes), jnp.float32) * 0.2
    bs = jax.random.normal(ks[1], (1, squeeze_planes), jnp.float32) * 0.1
    w1 = jax.random.normal(ks[2], (squeeze_planes, e1_planes), jnp.float32) * 0.2
    b1 = jax.random.normal(ks[3], (1, e1_planes), jnp.float32) * 0.1
    w3 = jax.random.normal(ks[4], (3, 3, squeeze_planes, e3_planes),
                           jnp.float32) * 0.2
    b3 = jax.random.normal(ks[5], (1, e3_planes), jnp.float32) * 0.1
    return (ws, bs, w1, b1, w3, b3)


if __name__ == "__main__":
    # Fire(inplanes=4, squeeze_planes=4, expand1x1_planes=8, expand3x3_planes=8)
    N, Cin, H, W = 2, 4, 16, 16
    Cs, E1, E3 = 4, 8, 8

    key = jax.random.PRNGKey(0)
    kx, kp = jax.random.split(key)
    x = jax.random.normal(kx, (N, Cin, H, W), jnp.float32)
    params = make_params(kp, Cin, Cs, E1, E3)

    ref = jax.block_until_ready(fire_reference(x, params))

    # f32 path: matches the PyTorch module numerics.
    out = jax.block_until_ready(fire_pallas(x, params))
    assert out.shape == (N, E1 + E3, H, W), out.shape
    err = float(jnp.max(jnp.abs(out - ref)))
    assert err < 1e-3, err

    # bf16 operands / f32 accumulation (v6e/v7x fast path), loose tolerance.
    out_bf16 = jax.block_until_ready(
        fire_pallas(x, params, compute_dtype=jnp.bfloat16))
    err_bf16 = float(jnp.max(jnp.abs(out_bf16 - ref)))
    assert err_bf16 < 2.5e-1, err_bf16

    print("KERNEL_OK")
</pallas_src>

<mosaic_0001>
module attributes {stable_mosaic.version = 11 : i64} {
  func.func @kernel(%arg0: i32, %arg1: memref<1x4x256xf32, #tpu.memory_space<vmem>>, %arg2: memref<4x4xf32, #tpu.memory_space<vmem>>, %arg3: memref<4x1xf32, #tpu.memory_space<vmem>>, %arg4: memref<8x4xf32, #tpu.memory_space<vmem>>, %arg5: memref<8x1xf32, #tpu.memory_space<vmem>>, %arg6: memref<9x8x4xf32, #tpu.memory_space<vmem>>, %arg7: memref<8x1xf32, #tpu.memory_space<vmem>>, %arg8: memref<9x256xf32, #tpu.memory_space<vmem>>, %arg9: memref<1x16x256xf32, #tpu.memory_space<vmem>>) attributes {dimension_semantics = [#tpu.dimension_semantics<parallel>], iteration_bounds = array<i64: 2>, scalar_prefetch = 0 : i64, scratch_operands = 0 : i64, tpu.core_type = #tpu.core_type<tc>, window_params = [{transform_indices = @transform_0, window_bounds = array<i64: 1, 4, 256>}, {pipeline_mode = #tpu.pipeline_mode<synchronous>, transform_indices = @transform_1, window_bounds = array<i64: 4, 4>}, {pipeline_mode = #tpu.pipeline_mode<synchronous>, transform_indices = @transform_2, window_bounds = array<i64: 4, 1>}, {pipeline_mode = #tpu.pipeline_mode<synchronous>, transform_indices = @transform_3, window_bounds = array<i64: 8, 4>}, {pipeline_mode = #tpu.pipeline_mode<synchronous>, transform_indices = @transform_4, window_bounds = array<i64: 8, 1>}, {pipeline_mode = #tpu.pipeline_mode<synchronous>, transform_indices = @transform_5, window_bounds = array<i64: 9, 8, 4>}, {pipeline_mode = #tpu.pipeline_mode<synchronous>, transform_indices = @transform_6, window_bounds = array<i64: 8, 1>}, {pipeline_mode = #tpu.pipeline_mode<synchronous>, transform_indices = @transform_7, window_bounds = array<i64: 9, 256>}, {transform_indices = @transform_8, window_bounds = array<i64: 1, 16, 256>}]} {
    %c0 = arith.constant 0 : index
    %c0_0 = arith.constant 0 : index
    %c0_1 = arith.constant 0 : index
    %0 = vector.load %arg1[%c0, %c0_0, %c0_1] : memref<1x4x256xf32, #tpu.memory_space<vmem>>, vector<1x4x256xf32>
    %1 = vector.shape_cast %0 : vector<1x4x256xf32> to vector<4x256xf32>
    %c0_2 = arith.constant 0 : index
    %c0_3 = arith.constant 0 : index
    %2 = vector.load %arg2[%c0_2, %c0_3] : memref<4x4xf32, #tpu.memory_space<vmem>>, vector<4x4xf32>
    %cst = arith.constant dense<0.000000e+00> : vector<4x256xf32>
    %3 = tpu.matmul %2, %1, %cst {dimension_numbers = #tpu.dot_dimension_numbers<[1], [0], [0], [1], [0, 0, 1, 1], [], []>} : vector<4x4xf32>, vector<4x256xf32>, vector<4x256xf32> -> vector<4x256xf32>
    %c0_4 = arith.constant 0 : index
    %c0_5 = arith.constant 0 : index
    %4 = vector.load %arg3[%c0_4, %c0_5] : memref<4x1xf32, #tpu.memory_space<vmem>>, vector<4x1xf32>
    %5 = vector.broadcast %4 : vector<4x1xf32> to vector<4x256xf32>
    %6 = arith.addf %3, %5 : vector<4x256xf32>
    %cst_6 = arith.constant 0.000000e+00 : f32
    %7 = vector.broadcast %cst_6 : f32 to vector<4x256xf32>
    %8 = arith.maximumf %6, %7 : vector<4x256xf32>
    %c0_7 = arith.constant 0 : index
    %c0_8 = arith.constant 0 : index
    %9 = vector.load %arg4[%c0_7, %c0_8] : memref<8x4xf32, #tpu.memory_space<vmem>>, vector<8x4xf32>
    %cst_9 = arith.constant dense<0.000000e+00> : vector<8x256xf32>
    %10 = tpu.matmul %9, %8, %cst_9 {dimension_numbers = #tpu.dot_dimension_numbers<[1], [0], [0], [1], [0, 0, 1, 1], [], []>} : vector<8x4xf32>, vector<4x256xf32>, vector<8x256xf32> -> vector<8x256xf32>
    %c0_10 = arith.constant 0 : index
    %c0_11 = arith.constant 0 : index
    %11 = vector.load %arg5[%c0_10, %c0_11] : memref<8x1xf32, #tpu.memory_space<vmem>>, vector<8x1xf32>
    %12 = vector.broadcast %11 : vector<8x1xf32> to vector<8x256xf32>
    %13 = arith.addf %10, %12 : vector<8x256xf32>
    %cst_12 = arith.constant 0.000000e+00 : f32
    %14 = vector.broadcast %cst_12 : f32 to vector<8x256xf32>
    %15 = arith.maximumf %13, %14 : vector<8x256xf32>
    %c0_13 = arith.constant 0 : index
    %c0_14 = arith.constant 0 : index
    %c0_15 = arith.constant 0 : index
    %16 = vector.load %arg9[%c0_13, %c0_14, %c0_15] : memref<1x16x256xf32, #tpu.memory_space<vmem>>, vector<1x8x256xf32>
    %17 = vector.shape_cast %16 : vector<1x8x256xf32> to vector<8x256xf32>
    %18 = vector.shape_cast %15 : vector<8x256xf32> to vector<1x8x256xf32>
    tpu.vector_store %arg9[%c0_13, %c0_14, %c0_15], %18 {strides = array<i32>} : memref<1x16x256xf32, #tpu.memory_space<vmem>>, vector<1x8x256xf32>,
    %c17_i32 = arith.constant 17 : i32
    %19 = tpu.dynamic_rotate %8 by %c17_i32 dim 1 : vector<4x256xf32>, i32 -> vector<4x256xf32>
    %c0_16 = arith.constant 0 : index
    %c0_17 = arith.constant 0 : index
    %20 = vector.load %arg8[%c0_16, %c0_17] : memref<9x256xf32, #tpu.memory_space<vmem>>, vector<1x256xf32>
    %21 = vector.broadcast %20 : vector<1x256xf32> to vector<4x256xf32>
    %22 = arith.mulf %19, %21 : vector<4x256xf32>
    %c0_18 = arith.constant 0 : index
    %c0_19 = arith.constant 0 : index
    %c0_20 = arith.constant 0 : index
    %23 = vector.load %arg6[%c0_18, %c0_19, %c0_20] : memref<9x8x4xf32, #tpu.memory_space<vmem>>, vector<1x8x4xf32>
    %24 = vector.shape_cast %23 : vector<1x8x4xf32> to vector<8x4xf32>
    %cst_21 = arith.constant dense<0.000000e+00> : vector<8x256xf32>
    %25 = tpu.matmul %24, %22, %cst_21 {dimension_numbers = #tpu.dot_dimension_numbers<[1], [0], [0], [1], [0, 0, 1, 1], [], []>} : vector<8x4xf32>, vector<4x256xf32>, vector<8x256xf32> -> vector<8x256xf32>
    %c16_i32 = arith.constant 16 : i32
    %26 = tpu.dynamic_rotate %8 by %c16_i32 dim 1 : vector<4x256xf32>, i32 -> vector<4x256xf32>
    %c1 = arith.constant 1 : index
    %c0_22 = arith.constant 0 : index
    %27 = vector.load %arg8[%c1, %c0_22] : memref<9x256xf32, #tpu.memory_space<vmem>>, vector<1x256xf32>
    %28 = vector.broadcast %27 : vector<1x256xf32> to vector<4x256xf32>
    %29 = arith.mulf %26, %28 : vector<4x256xf32>
    %c1_23 = arith.constant 1 : index
    %c0_24 = arith.constant 0 : index
    %c0_25 = arith.constant 0 : index
    %30 = vector.load %arg6[%c1_23, %c0_24, %c0_25] : memref<9x8x4xf32, #tpu.memory_space<vmem>>, vector<1x8x4xf32>
    %31 = vector.shape_cast %30 : vector<1x8x4xf32> to vector<8x4xf32>
    %cst_26 = arith.constant dense<0.000000e+00> : vector<8x256xf32>
    %32 = tpu.matmul %31, %29, %cst_26 {dimension_numbers = #tpu.dot_dimension_numbers<[1], [0], [0], [1], [0, 0, 1, 1], [], []>} : vector<8x4xf32>, vector<4x256xf32>, vector<8x256xf32> -> vector<8x256xf32>
    %33 = arith.addf %25, %32 : vector<8x256xf32>
    %c15_i32 = arith.constant 15 : i32
    %34 = tpu.dynamic_rotate %8 by %c15_i32 dim 1 : vector<4x256xf32>, i32 -> vector<4x256xf32>
    %c2 = arith.constant 2 : index
    %c0_27 = arith.constant 0 : index
    %35 = vector.load %arg8[%c2, %c0_27] : memref<9x256xf32, #tpu.memory_space<vmem>>, vector<1x256xf32>
    %36 = vector.broadcast %35 : vector<1x256xf32> to vector<4x256xf32>
    %37 = arith.mulf %34, %36 : vector<4x256xf32>
    %c2_28 = arith.constant 2 : index
    %c0_29 = arith.constant 0 : index
    %c0_30 = arith.constant 0 : index
    %38 = vector.load %arg6[%c2_28, %c0_29, %c0_30] : memref<9x8x4xf32, #tpu.memory_space<vmem>>, vector<1x8x4xf32>
    %39 = vector.shape_cast %38 : vector<1x8x4xf32> to vector<8x4xf32>
    %cst_31 = arith.constant dense<0.000000e+00> : vector<8x256xf32>
    %40 = tpu.matmul %39, %37, %cst_31 {dimension_numbers = #tpu.dot_dimension_numbers<[1], [0], [0], [1], [0, 0, 1, 1], [], []>} : vector<8x4xf32>, vector<4x256xf32>, vector<8x256xf32> -> vector<8x256xf32>
    %41 = arith.addf %33, %40 : vector<8x256xf32>
    %c1_i32 = arith.constant 1 : i32
    %42 = tpu.dynamic_rotate %8 by %c1_i32 dim 1 : vector<4x256xf32>, i32 -> vector<4x256xf32>
    %c3 = arith.constant 3 : index
    %c0_32 = arith.constant 0 : index
    %43 = vector.load %arg8[%c3, %c0_32] : memref<9x256xf32, #tpu.memory_space<vmem>>, vector<1x256xf32>
    %44 = vector.broadcast %43 : vector<1x256xf32> to vector<4x256xf32>
    %45 = arith.mulf %42, %44 : vector<4x256xf32>
    %c3_33 = arith.constant 3 : index
    %c0_34 = arith.constant 0 : index
    %c0_35 = arith.constant 0 : index
    %46 = vector.load %arg6[%c3_33, %c0_34, %c0_35] : memref<9x8x4xf32, #tpu.memory_space<vmem>>, vector<1x8x4xf32>
    %47 = vector.shape_cast %46 : vector<1x8x4xf32> to vector<8x4xf32>
    %cst_36 = arith.constant dense<0.000000e+00> : vector<8x256xf32>
    %48 = tpu.matmul %47, %45, %cst_36 {dimension_numbers = #tpu.dot_dimension_numbers<[1], [0], [0], [1], [0, 0, 1, 1], [], []>} : vector<8x4xf32>, vector<4x256xf32>, vector<8x256xf32> -> vector<8x256xf32>
    %49 = arith.addf %41, %48 : vector<8x256xf32>
    %c4 = arith.constant 4 : index
    %c0_37 = arith.constant 0 : index
    %c0_38 = arith.constant 0 : index
    %50 = vector.load %arg6[%c4, %c0_37, %c0_38] : memref<9x8x4xf32, #tpu.memory_space<vmem>>, vector<1x8x4xf32>
    %51 = vector.shape_cast %50 : vector<1x8x4xf32> to vector<8x4xf32>
    %cst_39 = arith.constant dense<0.000000e+00> : vector<8x256xf32>
    %52 = tpu.matmul %51, %8, %cst_39 {dimension_numbers = #tpu.dot_dimension_numbers<[1], [0], [0], [1], [0, 0, 1, 1], [], []>} : vector<8x4xf32>, vector<4x256xf32>, vector<8x256xf32> -> vector<8x256xf32>
    %53 = arith.addf %49, %52 : vector<8x256xf32>
    %c255_i32 = arith.constant 255 : i32
    %54 = tpu.dynamic_rotate %8 by %c255_i32 dim 1 : vector<4x256xf32>, i32 -> vector<4x256xf32>
    %c5 = arith.constant 5 : index
    %c0_40 = arith.constant 0 : index
    %55 = vector.load %arg8[%c5, %c0_40] : memref<9x256xf32, #tpu.memory_space<vmem>>, vector<1x256xf32>
    %56 = vector.broadcast %55 : vector<1x256xf32> to vector<4x256xf32>
    %57 = arith.mulf %54, %56 : vector<4x256xf32>
    %c5_41 = arith.constant 5 : index
    %c0_42 = arith.constant 0 : index
    %c0_43 = arith.constant 0 : index
    %58 = vector.load %arg6[%c5_41, %c0_42, %c0_43] : memref<9x8x4xf32, #tpu.memory_space<vmem>>, vector<1x8x4xf32>
    %59 = vector.shape_cast %58 : vector<1x8x4xf32> to vector<8x4xf32>
    %cst_44 = arith.constant dense<0.000000e+00> : vector<8x256xf32>
    %60 = tpu.matmul %59, %57, %cst_44 {dimension_numbers = #tpu.dot_dimension_numbers<[1], [0], [0], [1], [0, 0, 1, 1], [], []>} : vector<8x4xf32>, vector<4x256xf32>, vector<8x256xf32> -> vector<8x256xf32>
    %61 = arith.addf %53, %60 : vector<8x256xf32>
    %c241_i32 = arith.constant 241 : i32
    %62 = tpu.dynamic_rotate %8 by %c241_i32 dim 1 : vector<4x256xf32>, i32 -> vector<4x256xf32>
    %c6 = arith.constant 6 : index
    %c0_45 = arith.constant 0 : index
    %63 = vector.load %arg8[%c6, %c0_45] : memref<9x256xf32, #tpu.memory_space<vmem>>, vector<1x256xf32>
    %64 = vector.broadcast %63 : vector<1x256xf32> to vector<4x256xf32>
    %65 = arith.mulf %62, %64 : vector<4x256xf32>
    %c6_46 = arith.constant 6 : index
    %c0_47 = arith.constant 0 : index
    %c0_48 = arith.constant 0 : index
    %66 = vector.load %arg6[%c6_46, %c0_47, %c0_48] : memref<9x8x4xf32, #tpu.memory_space<vmem>>, vector<1x8x4xf32>
    %67 = vector.shape_cast %66 : vector<1x8x4xf32> to vector<8x4xf32>
    %cst_49 = arith.constant dense<0.000000e+00> : vector<8x256xf32>
    %68 = tpu.matmul %67, %65, %cst_49 {dimension_numbers = #tpu.dot_dimension_numbers<[1], [0], [0], [1], [0, 0, 1, 1], [], []>} : vector<8x4xf32>, vector<4x256xf32>, vector<8x256xf32> -> vector<8x256xf32>
    %69 = arith.addf %61, %68 : vector<8x256xf32>
    %c240_i32 = arith.constant 240 : i32
    %70 = tpu.dynamic_rotate %8 by %c240_i32 dim 1 : vector<4x256xf32>, i32 -> vector<4x256xf32>
    %c7 = arith.constant 7 : index
    %c0_50 = arith.constant 0 : index
    %71 = vector.load %arg8[%c7, %c0_50] : memref<9x256xf32, #tpu.memory_space<vmem>>, vector<1x256xf32>
    %72 = vector.broadcast %71 : vector<1x256xf32> to vector<4x256xf32>
    %73 = arith.mulf %70, %72 : vector<4x256xf32>
    %c7_51 = arith.constant 7 : index
    %c0_52 = arith.constant 0 : index
    %c0_53 = arith.constant 0 : index
    %74 = vector.load %arg6[%c7_51, %c0_52, %c0_53] : memref<9x8x4xf32, #tpu.memory_space<vmem>>, vector<1x8x4xf32>
    %75 = vector.shape_cast %74 : vector<1x8x4xf32> to vector<8x4xf32>
    %cst_54 = arith.constant dense<0.000000e+00> : vector<8x256xf32>
    %76 = tpu.matmul %75, %73, %cst_54 {dimension_numbers = #tpu.dot_dimension_numbers<[1], [0], [0], [1], [0, 0, 1, 1], [], []>} : vector<8x4xf32>, vector<4x256xf32>, vector<8x256xf32> -> vector<8x256xf32>
    %77 = arith.addf %69, %76 : vector<8x256xf32>
    %c239_i32 = arith.constant 239 : i32
    %78 = tpu.dynamic_rotate %8 by %c239_i32 dim 1 : vector<4x256xf32>, i32 -> vector<4x256xf32>
    %c8 = arith.constant 8 : index
    %c0_55 = arith.constant 0 : index
    %79 = vector.load %arg8[%c8, %c0_55] : memref<9x256xf32, #tpu.memory_space<vmem>>, vector<1x256xf32>
    %80 = vector.broadcast %79 : vector<1x256xf32> to vector<4x256xf32>
    %81 = arith.mulf %78, %80 : vector<4x256xf32>
    %c8_56 = arith.constant 8 : index
    %c0_57 = arith.constant 0 : index
    %c0_58 = arith.constant 0 : index
    %82 = vector.load %arg6[%c8_56, %c0_57, %c0_58] : memref<9x8x4xf32, #tpu.memory_space<vmem>>, vector<1x8x4xf32>
    %83 = vector.shape_cast %82 : vector<1x8x4xf32> to vector<8x4xf32>
    %cst_59 = arith.constant dense<0.000000e+00> : vector<8x256xf32>
    %84 = tpu.matmul %83, %81, %cst_59 {dimension_numbers = #tpu.dot_dimension_numbers<[1], [0], [0], [1], [0, 0, 1, 1], [], []>} : vector<8x4xf32>, vector<4x256xf32>, vector<8x256xf32> -> vector<8x256xf32>
    %85 = arith.addf %77, %84 : vector<8x256xf32>
    %c0_60 = arith.constant 0 : index
    %c0_61 = arith.constant 0 : index
    %86 = vector.load %arg7[%c0_60, %c0_61] : memref<8x1xf32, #tpu.memory_space<vmem>>, vector<8x1xf32>
    %87 = vector.broadcast %86 : vector<8x1xf32> to vector<8x256xf32>
    %88 = arith.addf %85, %87 : vector<8x256xf32>
    %cst_62 = arith.constant 0.000000e+00 : f32
    %89 = vector.broadcast %cst_62 : f32 to vector<8x256xf32>
    %90 = arith.maximumf %88, %89 : vector<8x256xf32>
    %c0_63 = arith.constant 0 : index
    %c8_64 = arith.constant 8 : index
    %c0_65 = arith.constant 0 : index
    %91 = vector.load %arg9[%c0_63, %c8_64, %c0_65] : memref<1x16x256xf32, #tpu.memory_space<vmem>>, vector<1x8x256xf32>
    %92 = vector.shape_cast %91 : vector<1x8x256xf32> to vector<8x256xf32>
    %93 = vector.shape_cast %90 : vector<8x256xf32> to vector<1x8x256xf32>
    tpu.vector_store %arg9[%c0_63, %c8_64, %c0_65], %93 {strides = array<i32>} : memref<1x16x256xf32, #tpu.memory_space<vmem>>, vector<1x8x256xf32>,
    return
  }
  func.func @transform_0(%arg0: i32) -> (i32, i32, i32) {
    %c0_i32 = arith.constant 0 : i32
    %c0_i32_0 = arith.constant 0 : i32
    %c0_i32_1 = arith.constant 0 : i32
    return %arg0, %c0_i32, %c0_i32_0 : i32, i32, i32
  }
  func.func @transform_1(%arg0: i32) -> (i32, i32) {
    %c0_i32 = arith.constant 0 : i32
    %c0_i32_0 = arith.constant 0 : i32
    %c0_i32_1 = arith.constant 0 : i32
    return %c0_i32, %c0_i32_0 : i32, i32
  }
  func.func @transform_2(%arg0: i32) -> (i32, i32) {
    %c0_i32 = arith.constant 0 : i32
    %c0_i32_0 = arith.constant 0 : i32
    %c0_i32_1 = arith.constant 0 : i32
    return %c0_i32, %c0_i32_0 : i32, i32
  }
  func.func @transform_3(%arg0: i32) -> (i32, i32) {
    %c0_i32 = arith.constant 0 : i32
    %c0_i32_0 = arith.constant 0 : i32
    %c0_i32_1 = arith.constant 0 : i32
    return %c0_i32, %c0_i32_0 : i32, i32
  }
  func.func @transform_4(%arg0: i32) -> (i32, i32) {
    %c0_i32 = arith.constant 0 : i32
    %c0_i32_0 = arith.constant 0 : i32
    %c0_i32_1 = arith.constant 0 : i32
    return %c0_i32, %c0_i32_0 : i32, i32
  }
  func.func @transform_5(%arg0: i32) -> (i32, i32, i32) {
    %c0_i32 = arith.constant 0 : i32
    %c0_i32_0 = arith.constant 0 : i32
    %c0_i32_1 = arith.constant 0 : i32
    %c0_i32_2 = arith.constant 0 : i32
    return %c0_i32, %c0_i32_0, %c0_i32_1 : i32, i32, i32
  }
  func.func @transform_6(%arg0: i32) -> (i32, i32) {
    %c0_i32 = arith.constant 0 : i32
    %c0_i32_0 = arith.constant 0 : i32
    %c0_i32_1 = arith.constant 0 : i32
    return %c0_i32, %c0_i32_0 : i32, i32
  }
  func.func @transform_7(%arg0: i32) -> (i32, i32) {
    %c0_i32 = arith.constant 0 : i32
    %c0_i32_0 = arith.constant 0 : i32
    %c0_i32_1 = arith.constant 0 : i32
    return %c0_i32, %c0_i32_0 : i32, i32
  }
  func.func @transform_8(%arg0: i32) -> (i32, i32, i32) {
    %c0_i32 = arith.constant 0 : i32
    %c0_i32_0 = arith.constant 0 : i32
    %c0_i32_1 = arith.constant 0 : i32
    return %arg0, %c0_i32, %c0_i32_0 : i32, i32, i32
  }
}

</mosaic_0001>

<llo_original>
// kernel: tpu_custom_call.1
$region0: #{tpu_custom_call.1}
  #allocation0 [shape = 'u32[]', space=smem, size = 0x4, offset = 0x4, fixed_abs, tag = 'smem constant byte address 0x4 - core index']
  #allocation1 [shape = 'u32[144,128]{1,0:T(1,128)}', space=vmem, size = 0x12000, scoped, tag = 'internal scratch']
  %s0 = inlined_call_operand.vmem [shape: f32[2,4,256], index: 0, kind: input, shape index: {}]
  %s1 = inlined_call_operand.vmem [shape: f32[4,4], index: 1, kind: input, shape index: {}]
  %s2 = inlined_call_operand.vmem [shape: f32[4,1], index: 2, kind: input, shape index: {}]
  %s3 = inlined_call_operand.vmem [shape: f32[8,4], index: 3, kind: input, shape index: {}]
  %s4 = inlined_call_operand.vmem [shape: f32[8,1], index: 4, kind: input, shape index: {}]
  %s5 = inlined_call_operand.vmem [shape: f32[9,8,4], index: 5, kind: input, shape index: {}]
  %s6 = inlined_call_operand.vmem [shape: f32[8,1], index: 6, kind: input, shape index: {}]
  %s7 = inlined_call_operand.vmem [shape: f32[9,256], index: 7, kind: input, shape index: {}]
  %s8 = inlined_call_operand.hbm [shape: f32[2,16,256], index: 8, kind: output, shape index: {}]
  %s9 = sld [smem:[#allocation0]]
  $region65: #{tpu_custom_call.1} parent=0
    _
  %s11 = ssub.s32 1, %s9
  %s12 = scalar_select 0, %s11, %s9
  $region1: #{tpu_custom_call.1} parent=0
    #allocation2 [shape = 'u8[32768]{0}', space=vmem, size = 0x8000, scoped, tag = 'output window, operand 0']
    #allocation3 [shape = 's32[2]{0}', space=sflag, size = 0x8, scoped, tag = 'scoped memory for tpu_custom_call.1']
    %13 = vsyncpa [#allocation3], 0
    %s14 = scalar_lea.sflag [#allocation3], 1
    %15 = vsyncpa %s14, 0
    loop: start=0, step=1, limit=4
    $region2: #{tpu_custom_call.1} parent=1 // loop_pre_header
      _
    $region3: #{tpu_custom_call.1} parent=1 // loop_header
      %s17 = sphi 0, %s21
      %p18 = scmp.ge.s32.totalorder %s17, 4
      %s27 = sphi 0, %s29
      %s30 = sphi 0, %s27
      %s31 = sphi 0, %s30
      %s47 = sphi 0, %s31
      %s51 = sphi 0, %s51
      %s53 = sphi 0, %s51
      %s54 = sphi 0, %s53
      %s68 = sphi 0, %s54
      %s72 = sphi 0, %s72
      %s74 = sphi 0, %s72
      %s75 = sphi 0, %s74
      %s89 = sphi 0, %s75
      %s93 = sphi 0, %s93
      %s95 = sphi 0, %s93
      %s96 = sphi 0, %s95
      %s110 = sphi 0, %s96
      %s114 = sphi 0, %s114
      %s116 = sphi 0, %s114
      %s117 = sphi 0, %s116
      %s131 = sphi 0, %s117
      %s135 = sphi 0, %s135
      %s137 = sphi 0, %s135
      %s138 = sphi 0, %s137
      %s152 = sphi 0, %s138
      %s156 = sphi 0, %s156
      %s158 = sphi 0, %s156
      %s159 = sphi 0, %s158
      %s173 = sphi 0, %s159
      %s177 = sphi 0, %s177
      %s179 = sphi 0, %s177
      %s180 = sphi 0, %s179
      %s194 = sphi 0, %s180
      %s200 = sphi 0, %s202
      %s203 = sphi 0, %s200
      %s204 = sphi 0, %s203
      %s220 = sphi 0, %s204
    $region4: #{tpu_custom_call.1} parent=1 // loop_header_branch
      %20 = sbr.rel (%p18) target = $region8
    $region5: #{tpu_custom_call.1} parent=1 // loop_body
      %s22 = ssub.s32 %s17, 1
      %s23 = ssub.s32 %s17, 2
      %s24 = sadd.s32 %s17, 1
      %s25 = ssub.s32 %s17, %s24
      %p26 = scmp.eq.s32.totalorder %s25, 0
      %s28 = sadd.s32 %s27, 1
      %s29 = scalar_select %p26, %s27, %s28
      %p32 = pneg %p26
      %p33 = scmp.eq.s32.totalorder %s17, 1
      %p34 = por %p32, %p33
      %p35 = scmp.ne.s32.totalorder %s27, %s30
      %p36 = scmp.eq.s32.totalorder %s17, 0
      %p37 = por %p35, %p36
      %p38 = scmp.ne.s32.totalorder %s27, %s30
      %p39 = scmp.eq.s32.totalorder %s22, 1
      %p40 = por %p38, %p39
      %p41 = scmp.ne.s32.totalorder %s30, %s31
      %p42 = scmp.eq.s32.totalorder %s22, 0
      %p43 = por %p41, %p42
      %p44 = scmp.ne.s32.totalorder %s30, %s31
      %p45 = scmp.eq.s32.totalorder %s23, 1
      %p46 = por %p44, %p45
      %p48 = scmp.ne.s32.totalorder %s31, %s47
      %p49 = scmp.eq.s32.totalorder %s23, 0
      %p50 = por %p48, %p49
      %s52 = sadd.s32 %s51, 1
      %p55 = scmp.eq.s32.totalorder %s17, 1
      %p56 = scmp.ne.s32.totalorder %s51, %s53
      %p57 = scmp.eq.s32.totalorder %s17, 0
      %p58 = por %p56, %p57
      %p59 = scmp.ne.s32.totalorder %s51, %s53
      %p60 = scmp.eq.s32.totalorder %s22, 1
      %p61 = por %p59, %p60
      %p62 = scmp.ne.s32.totalorder %s53, %s54
      %p63 = scmp.eq.s32.totalorder %s22, 0
      %p64 = por %p62, %p63
      %p65 = scmp.ne.s32.totalorder %s53, %s54
      %p66 = scmp.eq.s32.totalorder %s23, 1
      %p67 = por %p65, %p66
      %p69 = scmp.ne.s32.totalorder %s54, %s68
      %p70 = scmp.eq.s32.totalorder %s23, 0
      %p71 = por %p69, %p70
      %s73 = sadd.s32 %s72, 1
      %p76 = scmp.eq.s32.totalorder %s17, 1
      %p77 = scmp.ne.s32.totalorder %s72, %s74
      %p78 = scmp.eq.s32.totalorder %s17, 0
      %p79 = por %p77, %p78
      %p80 = scmp.ne.s32.totalorder %s72, %s74
      %p81 = scmp.eq.s32.totalorder %s22, 1
      %p82 = por %p80, %p81
      %p83 = scmp.ne.s32.totalorder %s74, %s75
      %p84 = scmp.eq.s32.totalorder %s22, 0
      %p85 = por %p83, %p84
      %p86 = scmp.ne.s32.totalorder %s74, %s75
      %p87 = scmp.eq.s32.totalorder %s23, 1
      %p88 = por %p86, %p87
      %p90 = scmp.ne.s32.totalorder %s75, %s89
      %p91 = scmp.eq.s32.totalorder %s23, 0
      %p92 = por %p90, %p91
      %s94 = sadd.s32 %s93, 1
      %p97 = scmp.eq.s32.totalorder %s17, 1
      %p98 = scmp.ne.s32.totalorder %s93, %s95
      %p99 = scmp.eq.s32.totalorder %s17, 0
      %p100 = por %p98, %p99
      %p101 = scmp.ne.s32.totalorder %s93, %s95
      %p102 = scmp.eq.s32.totalorder %s22, 1
      %p103 = por %p101, %p102
      %p104 = scmp.ne.s32.totalorder %s95, %s96
      %p105 = scmp.eq.s32.totalorder %s22, 0
      %p106 = por %p104, %p105
      %p107 = scmp.ne.s32.totalorder %s95, %s96
      %p108 = scmp.eq.s32.totalorder %s23, 1
      %p109 = por %p107, %p108
      %p111 = scmp.ne.s32.totalorder %s96, %s110
      %p112 = scmp.eq.s32.totalorder %s23, 0
      %p113 = por %p111, %p112
      %s115 = sadd.s32 %s114, 1
      %p118 = scmp.eq.s32.totalorder %s17, 1
      %p119 = scmp.ne.s32.totalorder %s114, %s116
      %p120 = scmp.eq.s32.totalorder %s17, 0
      %p121 = por %p119, %p120
      %p122 = scmp.ne.s32.totalorder %s114, %s116
      %p123 = scmp.eq.s32.totalorder %s22, 1
      %p124 = por %p122, %p123
      %p125 = scmp.ne.s32.totalorder %s116, %s117
      %p126 = scmp.eq.s32.totalorder %s22, 0
      %p127 = por %p125, %p126
      %p128 = scmp.ne.s32.totalorder %s116, %s117
      %p129 = scmp.eq.s32.totalorder %s23, 1
      %p130 = por %p128, %p129
      %p132 = scmp.ne.s32.totalorder %s117, %s131
      %p133 = scmp.eq.s32.totalorder %s23, 0
      %p134 = por %p132, %p133
      %s136 = sadd.s32 %s135, 1
      %p139 = scmp.eq.s32.totalorder %s17, 1
      %p140 = scmp.ne.s32.totalorder %s135, %s137
      %p141 = scmp.eq.s32.totalorder %s17, 0
      %p142 = por %p140, %p141
      %p143 = scmp.ne.s32.totalorder %s135, %s137
      %p144 = scmp.eq.s32.totalorder %s22, 1
      %p145 = por %p143, %p144
      %p146 = scmp.ne.s32.totalorder %s137, %s138
      %p147 = scmp.eq.s32.totalorder %s22, 0
      %p148 = por %p146, %p147
      %p149 = scmp.ne.s32.totalorder %s137, %s138
      %p150 = scmp.eq.s32.totalorder %s23, 1
      %p151 = por %p149, %p150
      %p153 = scmp.ne.s32.totalorder %s138, %s152
      %p154 = scmp.eq.s32.totalorder %s23, 0
      %p155 = por %p153, %p154
      %s157 = sadd.s32 %s156, 1
      %p160 = scmp.eq.s32.totalorder %s17, 1
      %p161 = scmp.ne.s32.totalorder %s156, %s158
      %p162 = scmp.eq.s32.totalorder %s17, 0
      %p163 = por %p161, %p162
      %p164 = scmp.ne.s32.totalorder %s156, %s158
      %p165 = scmp.eq.s32.totalorder %s22, 1
      %p166 = por %p164, %p165
      %p167 = scmp.ne.s32.totalorder %s158, %s159
      %p168 = scmp.eq.s32.totalorder %s22, 0
      %p169 = por %p167, %p168
      %p170 = scmp.ne.s32.totalorder %s158, %s159
      %p171 = scmp.eq.s32.totalorder %s23, 1
      %p172 = por %p170, %p171
      %p174 = scmp.ne.s32.totalorder %s159, %s173
      %p175 = scmp.eq.s32.totalorder %s23, 0
      %p176 = por %p174, %p175
      %s178 = sadd.s32 %s177, 1
      %p181 = scmp.eq.s32.totalorder %s17, 1
      %p182 = scmp.ne.s32.totalorder %s177, %s179
      %p183 = scmp.eq.s32.totalorder %s17, 0
      %p184 = por %p182, %p183
      %p185 = scmp.ne.s32.totalorder %s177, %s179
      %p186 = scmp.eq.s32.totalorder %s22, 1
      %p187 = por %p185, %p186
      %p188 = scmp.ne.s32.totalorder %s179, %s180
      %p189 = scmp.eq.s32.totalorder %s22, 0
      %p190 = por %p188, %p189
      %p191 = scmp.ne.s32.totalorder %s179, %s180
      %p192 = scmp.eq.s32.totalorder %s23, 1
      %p193 = por %p191, %p192
      %p195 = scmp.ne.s32.totalorder %s180, %s194
      %p196 = scmp.eq.s32.totalorder %s23, 0
      %p197 = por %p195, %p196
      %s198 = ssub.s32 %s17, %s24
      %p199 = scmp.eq.s32.totalorder %s198, 0
      %s201 = sadd.s32 %s200, 1
      %s202 = scalar_select %p199, %s200, %s201
      %p205 = pneg %p199
      %p206 = scmp.eq.s32.totalorder %s17, 1
      %p207 = por %p205, %p206
      %p208 = scmp.ne.s32.totalorder %s200, %s203
      %p209 = scmp.eq.s32.totalorder %s17, 0
      %p210 = por %p208, %p209
      %p211 = scmp.ne.s32.totalorder %s200, %s203
      %p212 = scmp.eq.s32.totalorder %s22, 1
      %p213 = por %p211, %p212
      %p214 = scmp.ne.s32.totalorder %s203, %s204
      %p215 = scmp.eq.s32.totalorder %s22, 0
      %p216 = por %p214, %p215
      %p217 = scmp.ne.s32.totalorder %s203, %s204
      %p218 = scmp.eq.s32.totalorder %s23, 1
      %p219 = por %p217, %p218
      %p221 = scmp.ne.s32.totalorder %s204, %s220
      %p222 = scmp.eq.s32.totalorder %s23, 0
      %p223 = por %p221, %p222
      %p224 = scmp.le.s32.totalorder 1, %s17
      %p225 = scmp.lt.s32.totalorder %s17, 3
      %p226 = pnand %p224, %p225
      %p227 = pneg %p226
      // Predicated region
      $region9: #{tpu_custom_call.1} parent=5 // pred_check
        _
      $region10: #{tpu_custom_call.1} parent=5 // pred_check_branch
        %229 = sbr.rel (%p226) target = $region12
      $region11: #{tpu_custom_call.1} parent=5 // pred_region
        %s230 = ssub.s32 %s17, 1
        // Predicated region
        $region13: #{tpu_custom_call.1} parent=11 // pred_check
          %p231 = pneg %p64
        $region14: #{tpu_custom_call.1} parent=11 // pred_check_branch
          %233 = sbr.rel (%p231) target = $region16
        $region15: #{tpu_custom_call.1} parent=11 // pred_region
          _
        $region16: #{tpu_custom_call.1} parent=11 // pred_fallthru
          _
        // Predicated region
        $region17: #{tpu_custom_call.1} parent=11 // pred_check
          %p234 = pneg %p85
        $region18: #{tpu_custom_call.1} parent=11 // pred_check_branch
          %236 = sbr.rel (%p234) target = $region20
        $region19: #{tpu_custom_call.1} parent=11 // pred_region
          _
        $region20: #{tpu_custom_call.1} parent=11 // pred_fallthru
          _
        // Predicated region
        $region21: #{tpu_custom_call.1} parent=11 // pred_check
          %p237 = pneg %p106
        $region22: #{tpu_custom_call.1} parent=11 // pred_check_branch
          %239 = sbr.rel (%p237) target = $region24
        $region23: #{tpu_custom_call.1} parent=11 // pred_region
          _
        $region24: #{tpu_custom_call.1} parent=11 // pred_fallthru
          _
        // Predicated region
        $region25: #{tpu_custom_call.1} parent=11 // pred_check
          %p240 = pneg %p127
        $region26: #{tpu_custom_call.1} parent=11 // pred_check_branch
          %242 = sbr.rel (%p240) target = $region28
        $region27: #{tpu_custom_call.1} parent=11 // pred_region
          _
        $region28: #{tpu_custom_call.1} parent=11 // pred_fallthru
          _
        // Predicated region
        $region29: #{tpu_custom_call.1} parent=11 // pred_check
          %p243 = pneg %p148
        $region30: #{tpu_custom_call.1} parent=11 // pred_check_branch
          %245 = sbr.rel (%p243) target = $region32
        $region31: #{tpu_custom_call.1} parent=11 // pred_region
          _
        $region32: #{tpu_custom_call.1} parent=11 // pred_fallthru
          _
        // Predicated region
        $region33: #{tpu_custom_call.1} parent=11 // pred_check
          %p246 = pneg %p169
        $region34: #{tpu_custom_call.1} parent=11 // pred_check_branch
          %248 = sbr.rel (%p246) target = $region36
        $region35: #{tpu_custom_call.1} parent=11 // pred_region
          _
        $region36: #{tpu_custom_call.1} parent=11 // pred_fallthru
          _
        // Predicated region
        $region37: #{tpu_custom_call.1} parent=11 // pred_check
          %p249 = pneg %p190
        $region38: #{tpu_custom_call.1} parent=11 // pred_check_branch
          %251 = sbr.rel (%p249) target = $region40
        $region39: #{tpu_custom_call.1} parent=11 // pred_region
          _
        $region40: #{tpu_custom_call.1} parent=11 // pred_fallthru
          _
      $region12: #{tpu_custom_call.1} parent=5 // pred_fallthru
        _
      %p252 = scmp.lt.s32.totalorder %s17, 2
      // Predicated region
      $region41: #{tpu_custom_call.1} parent=5 // pred_check
        %p253 = pneg %p252
      $region42: #{tpu_custom_call.1} parent=5 // pred_check_branch
        %255 = sbr.rel (%p253) target = $region44
      $region43: #{tpu_custom_call.1} parent=5 // pred_region
        // Predicated region
        $region45: #{tpu_custom_call.1} parent=43 // pred_check
          %p256 = pneg %p37
        $region46: #{tpu_custom_call.1} parent=43 // pred_check_branch
          %258 = sbr.rel (%p256) target = $region48
        $region47: #{tpu_custom_call.1} parent=43 // pred_region
          %p259 = scmp.lt.s32.totalorder %s17, 1
          %s260 = scalar_select %p259, %s17, 1
          %s261 = smul.addr %s260, 2
          %s262 = smul.addr %s261, 4
          %s263 = scalar_lea.vmem %s0, %s262
        $region48: #{tpu_custom_call.1} parent=43 // pred_fallthru
          _
      $region44: #{tpu_custom_call.1} parent=5 // pred_fallthru
        _
      %p264 = scmp.le.s32.totalorder 1, %s17
      %p265 = scmp.lt.s32.totalorder %s17, 3
      %p266 = pnand %p264, %p265
      %p267 = pneg %p266
      // Predicated region
      $region49: #{tpu_custom_call.1} parent=5 // pred_check
        _
      $region50: #{tpu_custom_call.1} parent=5 // pred_check_branch
        %269 = sbr.rel (%p266) target = $region52
      $region51: #{tpu_custom_call.1} parent=5 // pred_region
        %s270 = ssub.s32 %s17, 1
        %p271 = scmp.lt.s32.totalorder %s22, 1
        %s272 = scalar_select %p271, %s22, 1
        %s273 = smul.addr %s272, 2
        %s274 = smul.addr %s273, 4
        %s275 = scalar_lea.vmem %s0, %s274
        %p276 = pneg %p43
        %p277 = pneg %p40
        %p278 = pneg %p64
        %p279 = pneg %p61
        %p280 = pneg %p85
        %p281 = pneg %p82
        %p282 = pneg %p106
        %p283 = pneg %p103
        %p284 = pneg %p127
        %p285 = pneg %p124
        %p286 = pneg %p148
        %p287 = pneg %p145
        %p288 = pneg %p169
        %p289 = pneg %p166
        %p290 = pneg %p190
        %p291 = pneg %p187
        %p292 = pneg %p216
        %p293 = pneg %p213
        %s294 = sand.u32 %s203, 1
        %s295 = scalar_lea.sflag [#allocation3], %s294
        %s296 = sand.u32 %s203, 1
        %s297 = smul.addr %s296, 32
        %s298 = scalar_lea.vmem [#allocation2], %s297
        %p299 = scmp.lt.s32.totalorder %s22, 1
        %s300 = scalar_select %p299, %s22, 1
        %s301 = smul.addr %s300, 2
        %s302 = smul.addr %s301, 4
        %s303 = scalar_lea.vmem %s0, %s302
        %v304 = vld [vmem:[%s303] sm:$0xff]
        %v305 = vld [vmem:[%s1] sm:$0xf]
        %v306 = vld [vmem:[%s2] sm:$0xf]
        %308 = vset.pattern.permute.xlu0 0
        %309 = vperm.xlu0 %308, %v306
        %v310 = vpop.permute.xlu0 %309
        %v313 = vcombine.high %v304, %v304
        %vm314 = vcmask 31744
        %v316 = vsel %vm314, %v305, 0
        %vm318 = vcmask 1043456
        %v319 = vsel %vm318, %v304, 0
        %v321 = vsel %vm318, %v313, 0
        %323 = vmatprep.subr.mxu0 %v321
        %324 = vmatpush1.msra.mxu0 %v319
        %325 = vmatprep.subr.mxu0 0.0
        %326 = vmatpush1.msra.mxu0 0.0
        %327 = vmatprep.subr.mxu0 0.0
        %328 = vmatpush1.msra.mxu0 0.0
        %329 = vmatprep.subr.mxu0 0.0
        %330 = vmatpush1.msra.mxu0 0.0
        %331 = vmatprep.subr.mxu0 0.0
        %332 = vmatpush1.msra.mxu0 0.0
        %333 = vmatprep.subr.mxu0 0.0
        %334 = vmatpush1.msra.mxu0 0.0
        %335 = vmatprep.subr.mxu0 0.0
        %336 = vmatpush1.msra.mxu0 0.0
        %337 = vmatprep.subr.mxu0 0.0
        %338 = vmatpush1.msra.mxu0 0.0
        %339 = vmatprep.subr.mxu0 0.0
        %340 = vmatpush1.msra.mxu0 0.0
        %341 = vmatprep.subr.mxu0 0.0
        %342 = vmatpush1.msra.mxu0 0.0
        %343 = vmatprep.subr.mxu0 0.0
        %344 = vmatpush1.msra.mxu0 0.0
        %345 = vmatprep.subr.mxu0 0.0
        %346 = vmatpush1.msra.mxu0 0.0
        %347 = vmatprep.subr.mxu0 0.0
        %348 = vmatpush1.msra.mxu0 0.0
        %349 = vmatprep.subr.mxu0 0.0
        %350 = vmatpush1.msra.mxu0 0.0
        %351 = vmatprep.subr.mxu0 0.0
        %352 = vmatpush1.msra.mxu0 0.0
        %353 = vmatprep.subr.mxu0 0.0
        %354 = vmatpush1.msra.mxu0 0.0
        %355 = vmatprep.subr.mxu0 0.0
        %356 = vmatpush1.msra.mxu0 0.0
        %357 = vmatprep.subr.mxu0 0.0
        %358 = vmatpush1.msra.mxu0 0.0
        %359 = vmatprep.subr.mxu0 0.0
        %360 = vmatpush1.msra.mxu0 0.0
        %361 = vmatprep.subr.mxu0 0.0
        %362 = vmatpush1.msra.mxu0 0.0
        %363 = vmatprep.subr.mxu0 0.0
        %364 = vmatpush1.msra.mxu0 0.0
        %365 = vmatprep.subr.mxu0 0.0
        %366 = vmatpush1.msra.mxu0 0.0
        %367 = vmatprep.subr.mxu0 0.0
        %368 = vmatpush1.msra.mxu0 0.0
        %369 = vmatprep.subr.mxu0 0.0
        %370 = vmatpush1.msra.mxu0 0.0
        %371 = vmatprep.subr.mxu0 0.0
        %372 = vmatpush1.msra.mxu0 0.0
        %373 = vmatprep.subr.mxu0 0.0
        %374 = vmatpush1.msra.mxu0 0.0
        %375 = vmatprep.subr.mxu0 0.0
        %376 = vmatpush1.msra.mxu0 0.0
        %377 = vmatprep.subr.mxu0 0.0
        %378 = vmatpush1.msra.mxu0 0.0
        %379 = vmatprep.subr.mxu0 0.0
        %380 = vmatpush1.msra.mxu0 0.0
        %381 = vmatprep.subr.mxu0 0.0
        %382 = vmatpush1.msra.mxu0 0.0
        %383 = vmatprep.subr.mxu0 0.0
        %384 = vmatpush1.msra.mxu0 0.0
        %385 = vmatprep.subr.mxu0 0.0
        %386 = vmatpush1.msra.mxu0 0.0
        %387 = vmatprep.mubr.f32.mxu0 0.0
        %388 = vmatmul.mubr.f32.gmra.mrb[0].mxu0 %v316
        %v389 = vpop.f32.mrb[0].mxu0
        %v390 = vadd.f32 %v310, %v389
        %v391 = vpop.f32.mrb[0].mxu0
        %v392 = vadd.f32 %v310, %v391
        %393 = vdwg.mxu0
        %v394 = vmax.f32 %v390, 0.0
        %v395 = vmax.f32 %v392, 0.0
        %v396 = vld [vmem:[%s3] sm:$0xff]
        %v397 = vld [vmem:[%s4] sm:$0xff]
        %399 = vset.pattern.permute.xlu0 0
        %400 = vperm.xlu0 %399, %v397
        %v401 = vpop.permute.xlu0 %400
        %v404 = vsel %vm314, %v396, 0
        %v407 = vsel %vm318, %v394, 0
        %v410 = vsel %vm318, %v395, 0
        %412 = vmatprep.subr.mxu0 %v410
        %413 = vmatpush1.msra.mxu0 %v407
        %414 = vmatprep.subr.mxu0 0.0
        %415 = vmatpush1.msra.mxu0 0.0
        %416 = vmatprep.subr.mxu0 0.0
        %417 = vmatpush1.msra.mxu0 0.0
        %418 = vmatprep.subr.mxu0 0.0
        %419 = vmatpush1.msra.mxu0 0.0
        %420 = vmatprep.subr.mxu0 0.0
        %421 = vmatpush1.msra.mxu0 0.0
        %422 = vmatprep.subr.mxu0 0.0
        %423 = vmatpush1.msra.mxu0 0.0
        %424 = vmatprep.subr.mxu0 0.0
        %425 = vmatpush1.msra.mxu0 0.0
        %426 = vmatprep.subr.mxu0 0.0
        %427 = vmatpush1.msra.mxu0 0.0
        %428 = vmatprep.subr.mxu0 0.0
        %429 = vmatpush1.msra.mxu0 0.0
        %430 = vmatprep.subr.mxu0 0.0
        %431 = vmatpush1.msra.mxu0 0.0
        %432 = vmatprep.subr.mxu0 0.0
        %433 = vmatpush1.msra.mxu0 0.0
        %434 = vmatprep.subr.mxu0 0.0
        %435 = vmatpush1.msra.mxu0 0.0
        %436 = vmatprep.subr.mxu0 0.0
        %437 = vmatpush1.msra.mxu0 0.0
        %438 = vmatprep.subr.mxu0 0.0
        %439 = vmatpush1.msra.mxu0 0.0
        %440 = vmatprep.subr.mxu0 0.0
        %441 = vmatpush1.msra.mxu0 0.0
        %442 = vmatprep.subr.mxu0 0.0
        %443 = vmatpush1.msra.mxu0 0.0
        %444 = vmatprep.subr.mxu0 0.0
        %445 = vmatpush1.msra.mxu0 0.0
        %446 = vmatprep.subr.mxu0 0.0
        %447 = vmatpush1.msra.mxu0 0.0
        %448 = vmatprep.subr.mxu0 0.0
        %449 = vmatpush1.msra.mxu0 0.0
        %450 = vmatprep.subr.mxu0 0.0
        %451 = vmatpush1.msra.mxu0 0.0
        %452 = vmatprep.subr.mxu0 0.0
        %453 = vmatpush1.msra.mxu0 0.0
        %454 = vmatprep.subr.mxu0 0.0
        %455 = vmatpush1.msra.mxu0 0.0
        %456 = vmatprep.subr.mxu0 0.0
        %457 = vmatpush1.msra.mxu0 0.0
        %458 = vmatprep.subr.mxu0 0.0
        %459 = vmatpush1.msra.mxu0 0.0
        %460 = vmatprep.subr.mxu0 0.0
        %461 = vmatpush1.msra.mxu0 0.0
        %462 = vmatprep.subr.mxu0 0.0
        %463 = vmatpush1.msra.mxu0 0.0
        %464 = vmatprep.subr.mxu0 0.0
        %465 = vmatpush1.msra.mxu0 0.0
        %466 = vmatprep.subr.mxu0 0.0
        %467 = vmatpush1.msra.mxu0 0.0
        %468 = vmatprep.subr.mxu0 0.0
        %469 = vmatpush1.msra.mxu0 0.0
        %470 = vmatprep.subr.mxu0 0.0
        %471 = vmatpush1.msra.mxu0 0.0
        %472 = vmatprep.subr.mxu0 0.0
        %473 = vmatpush1.msra.mxu0 0.0
        %474 = vmatprep.subr.mxu0 0.0
        %475 = vmatpush1.msra.mxu0 0.0
        %476 = vmatprep.mubr.f32.mxu0 0.0
        %477 = vmatmul.mubr.f32.gmra.mrb[0].mxu0 %v404
        %v478 = vpop.f32.mrb[0].mxu0
        %v479 = vadd.f32 %v401, %v478
        %v480 = vpop.f32.mrb[0].mxu0
        %v481 = vadd.f32 %v401, %v480
        %482 = vdwg.mxu0
        %v483 = vmax.f32 %v479, 0.0
        %v484 = vmax.f32 %v481, 0.0
        %485 = vst [vmem:[%s298] sm:$0xff] %v483
        %486 = vst [vmem:[%s298 + $0x8] sm:$0xff] %v484
        %487 = vrot.lane.b32.xlu0 %v394, 17
        %v488 = vpop.permute.xlu0 %487
        %489 = vrot.lane.b32.xlu0 %v395, 17
        %v490 = vpop.permute.xlu0 %489
        %v491 = vlaneseq
        %v492 = vand.u32 %v491, 127
        %vm493 = vcmp.lt.s32.totalorder %v492, 17
        %v494 = vsel %vm493, %v488, %v490
        %v495 = vsel %vm493, %v490, %v488
        %v496 = vld [vmem:[%s7] ss:$8 sm:$0x3]
        %v498 = vlaneseq
        %v499 = vshrl.u32 %v498, 7
        %v500 = vsub.s32 0, %v499
        %v501 = vrot.slane %v496, %v500
        %v502 = vlaneseq
        %v503 = vshrl.u32 %v502, 7
        %v504 = vsub.s32 1, %v503
        %v505 = vrot.slane %v496, %v504
        %v508 = vmul.f32 %v495, %v501
        %v509 = vmul.f32 %v494, %v505
        %v510 = vld [vmem:[%s5] sm:$0xff]
        %511 = vrot.lane.b32.xlu0 %v394, 16
        %v512 = vpop.permute.xlu0 %511
        %513 = vrot.lane.b32.xlu0 %v395, 16
        %v514 = vpop.permute.xlu0 %513
        %vm515 = vcmp.lt.s32.totalorder %v492, 16
        %v516 = vsel %vm515, %v512, %v514
        %v517 = vsel %vm515, %v514, %v512
        %s518 = scalar_lea.vmem %s7, 1
        %v519 = vld [vmem:[%s518] ss:$8 sm:$0x3]
        %v521 = vlaneseq
        %v522 = vshrl.u32 %v521, 7
        %v523 = vsub.s32 0, %v522
        %v524 = vrot.slane %v519, %v523
        %v525 = vlaneseq
        %v526 = vshrl.u32 %v525, 7
        %v527 = vsub.s32 1, %v526
        %v528 = vrot.slane %v519, %v527
        %v531 = vmul.f32 %v517, %v524
        %v532 = vmul.f32 %v516, %v528
        %s533 = scalar_lea.vmem %s5, 8
        %v534 = vld [vmem:[%s533] sm:$0xff]
        %v536 = vsel %vm314, %v534, 0
        %v539 = vsel %vm318, %v531, 0
        %v542 = vsel %vm318, %v532, 0
        %544 = vmatprep.subr.mxu0 %v542
        %545 = vmatpush1.msra.mxu0 %v539
        %546 = vmatprep.subr.mxu0 0.0
        %547 = vmatpush1.msra.mxu0 0.0
        %548 = vmatprep.subr.mxu0 0.0
        %549 = vmatpush1.msra.mxu0 0.0
        %550 = vmatprep.subr.mxu0 0.0
        %551 = vmatpush1.msra.mxu0 0.0
        %552 = vmatprep.subr.mxu0 0.0
        %553 = vmatpush1.msra.mxu0 0.0
        %554 = vmatprep.subr.mxu0 0.0
        %555 = vmatpush1.msra.mxu0 0.0
        %556 = vmatprep.subr.mxu0 0.0
        %557 = vmatpush1.msra.mxu0 0.0
        %558 = vmatprep.subr.mxu0 0.0
        %559 = vmatpush1.msra.mxu0 0.0
        %560 = vmatprep.subr.mxu0 0.0
        %561 = vmatpush1.msra.mxu0 0.0
        %562 = vmatprep.subr.mxu0 0.0
        %563 = vmatpush1.msra.mxu0 0.0
        %564 = vmatprep.subr.mxu0 0.0
        %565 = vmatpush1.msra.mxu0 0.0
        %566 = vmatprep.subr.mxu0 0.0
        %567 = vmatpush1.msra.mxu0 0.0
        %568 = vmatprep.subr.mxu0 0.0
        %569 = vmatpush1.msra.mxu0 0.0
        %570 = vmatprep.subr.mxu0 0.0
        %571 = vmatpush1.msra.mxu0 0.0
        %572 = vmatprep.subr.mxu0 0.0
        %573 = vmatpush1.msra.mxu0 0.0
        %574 = vmatprep.subr.mxu0 0.0
        %575 = vmatpush1.msra.mxu0 0.0
        %576 = vmatprep.subr.mxu0 0.0
        %577 = vmatpush1.msra.mxu0 0.0
        %578 = vmatprep.subr.mxu0 0.0
        %579 = vmatpush1.msra.mxu0 0.0
        %580 = vmatprep.subr.mxu0 0.0
        %581 = vmatpush1.msra.mxu0 0.0
        %582 = vmatprep.subr.mxu0 0.0
        %583 = vmatpush1.msra.mxu0 0.0
        %584 = vmatprep.subr.mxu0 0.0
        %585 = vmatpush1.msra.mxu0 0.0
        %586 = vmatprep.subr.mxu0 0.0
        %587 = vmatpush1.msra.mxu0 0.0
        %588 = vmatprep.subr.mxu0 0.0
        %589 = vmatpush1.msra.mxu0 0.0
        %590 = vmatprep.subr.mxu0 0.0
        %591 = vmatpush1.msra.mxu0 0.0
        %592 = vmatprep.subr.mxu0 0.0
        %593 = vmatpush1.msra.mxu0 0.0
        %594 = vmatprep.subr.mxu0 0.0
        %595 = vmatpush1.msra.mxu0 0.0
        %596 = vmatprep.subr.mxu0 0.0
        %597 = vmatpush1.msra.mxu0 0.0
        %598 = vmatprep.subr.mxu0 0.0
        %599 = vmatpush1.msra.mxu0 0.0
        %600 = vmatprep.subr.mxu0 0.0
        %601 = vmatpush1.msra.mxu0 0.0
        %602 = vmatprep.subr.mxu0 0.0
        %603 = vmatpush1.msra.mxu0 0.0
        %604 = vmatprep.subr.mxu0 0.0
        %605 = vmatpush1.msra.mxu0 0.0
        %606 = vmatprep.subr.mxu0 0.0
        %607 = vmatpush1.msra.mxu0 0.0
        %608 = vmatprep.mubr.f32.mxu0 0.0
        %609 = vmatmul.mubr.f32.gmra.mrb[0].mxu0 %v536
        %v610 = vpop.f32.mrb[0].mxu0
        %v611 = vadd.f32 0.0, %v610
        %v612 = vpop.f32.mrb[0].mxu0
        %v613 = vadd.f32 0.0, %v612
        %614 = vdwg.mxu0
        %v616 = vsel %vm314, %v510, 0
        %v619 = vsel %vm318, %v508, 0
        %v622 = vsel %vm318, %v509, 0
        %624 = vmatprep.subr.mxu0 %v622
        %625 = vmatpush1.msra.mxu0 %v619
        %626 = vmatprep.subr.mxu0 0.0
        %627 = vmatpush1.msra.mxu0 0.0
        %628 = vmatprep.subr.mxu0 0.0
        %629 = vmatpush1.msra.mxu0 0.0
        %630 = vmatprep.subr.mxu0 0.0
        %631 = vmatpush1.msra.mxu0 0.0
        %632 = vmatprep.subr.mxu0 0.0
        %633 = vmatpush1.msra.mxu0 0.0
        %634 = vmatprep.subr.mxu0 0.0
        %635 = vmatpush1.msra.mxu0 0.0
        %636 = vmatprep.subr.mxu0 0.0
        %637 = vmatpush1.msra.mxu0 0.0
        %638 = vmatprep.subr.mxu0 0.0
        %639 = vmatpush1.msra.mxu0 0.0
        %640 = vmatprep.subr.mxu0 0.0
        %641 = vmatpush1.msra.mxu0 0.0
        %642 = vmatprep.subr.mxu0 0.0
        %643 = vmatpush1.msra.mxu0 0.0
        %644 = vmatprep.subr.mxu0 0.0
        %645 = vmatpush1.msra.mxu0 0.0
        %646 = vmatprep.subr.mxu0 0.0
        %647 = vmatpush1.msra.mxu0 0.0
        %648 = vmatprep.subr.mxu0 0.0
        %649 = vmatpush1.msra.mxu0 0.0
        %650 = vmatprep.subr.mxu0 0.0
        %651 = vmatpush1.msra.mxu0 0.0
        %652 = vmatprep.subr.mxu0 0.0
        %653 = vmatpush1.msra.mxu0 0.0
        %654 = vmatprep.subr.mxu0 0.0
        %655 = vmatpush1.msra.mxu0 0.0
        %656 = vmatprep.subr.mxu0 0.0
        %657 = vmatpush1.msra.mxu0 0.0
        %658 = vmatprep.subr.mxu0 0.0
        %659 = vmatpush1.msra.mxu0 0.0
        %660 = vmatprep.subr.mxu0 0.0
        %661 = vmatpush1.msra.mxu0 0.0
        %662 = vmatprep.subr.mxu0 0.0
        %663 = vmatpush1.msra.mxu0 0.0
        %664 = vmatprep.subr.mxu0 0.0
        %665 = vmatpush1.msra.mxu0 0.0
        %666 = vmatprep.subr.mxu0 0.0
        %667 = vmatpush1.msra.mxu0 0.0
        %668 = vmatprep.subr.mxu0 0.0
        %669 = vmatpush1.msra.mxu0 0.0
        %670 = vmatprep.subr.mxu0 0.0
        %671 = vmatpush1.msra.mxu0 0.0
        %672 = vmatprep.subr.mxu0 0.0
        %673 = vmatpush1.msra.mxu0 0.0
        %674 = vmatprep.subr.mxu0 0.0
        %675 = vmatpush1.msra.mxu0 0.0
        %676 = vmatprep.subr.mxu0 0.0
        %677 = vmatpush1.msra.mxu0 0.0
        %678 = vmatprep.subr.mxu0 0.0
        %679 = vmatpush1.msra.mxu0 0.0
        %680 = vmatprep.subr.mxu0 0.0
        %681 = vmatpush1.msra.mxu0 0.0
        %682 = vmatprep.subr.mxu0 0.0
        %683 = vmatpush1.msra.mxu0 0.0
        %684 = vmatprep.subr.mxu0 0.0
        %685 = vmatpush1.msra.mxu0 0.0
        %686 = vmatprep.subr.mxu0 0.0
        %687 = vmatpush1.msra.mxu0 0.0
        %688 = vmatprep.mubr.f32.mxu0 0.0
        %689 = vmatmul.mubr.f32.gmra.mrb[0].mxu0 %v616
        %v690 = vpop.f32.mrb[0].mxu0
        %v691 = vadd.f32 %v611, %v690
        %v692 = vpop.f32.mrb[0].mxu0
        %v693 = vadd.f32 %v613, %v692
        %694 = vdwg.mxu0
        %695 = vrot.lane.b32.xlu0 %v394, 15
        %v696 = vpop.permute.xlu0 %695
        %697 = vrot.lane.b32.xlu0 %v395, 15
        %v698 = vpop.permute.xlu0 %697
        %vm699 = vcmp.lt.s32.totalorder %v492, 15
        %v700 = vsel %vm699, %v696, %v698
        %v701 = vsel %vm699, %v698, %v696
        %s702 = scalar_lea.vmem %s7, 2
        %v703 = vld [vmem:[%s702] ss:$8 sm:$0x3]
        %v705 = vlaneseq
        %v706 = vshrl.u32 %v705, 7
        %v707 = vsub.s32 0, %v706
        %v708 = vrot.slane %v703, %v707
        %v709 = vlaneseq
        %v710 = vshrl.u32 %v709, 7
        %v711 = vsub.s32 1, %v710
        %v712 = vrot.slane %v703, %v711
        %v715 = vmul.f32 %v701, %v708
        %v716 = vmul.f32 %v700, %v712
        %s717 = scalar_lea.vmem %s5, 16
        %v718 = vld [vmem:[%s717] sm:$0xff]
        %v720 = vsel %vm314, %v718, 0
        %v723 = vsel %vm318, %v715, 0
        %v726 = vsel %vm318, %v716, 0
        %728 = vmatprep.subr.mxu0 %v726
        %729 = vmatpush1.msra.mxu0 %v723
        %730 = vmatprep.subr.mxu0 0.0
        %731 = vmatpush1.msra.mxu0 0.0
        %732 = vmatprep.subr.mxu0 0.0
        %733 = vmatpush1.msra.mxu0 0.0
        %734 = vmatprep.subr.mxu0 0.0
        %735 = vmatpush1.msra.mxu0 0.0
        %736 = vmatprep.subr.mxu0 0.0
        %737 = vmatpush1.msra.mxu0 0.0
        %738 = vmatprep.subr.mxu0 0.0
        %739 = vmatpush1.msra.mxu0 0.0
        %740 = vmatprep.subr.mxu0 0.0
        %741 = vmatpush1.msra.mxu0 0.0
        %742 = vmatprep.subr.mxu0 0.0
        %743 = vmatpush1.msra.mxu0 0.0
        %744 = vmatprep.subr.mxu0 0.0
        %745 = vmatpush1.msra.mxu0 0.0
        %746 = vmatprep.subr.mxu0 0.0
        %747 = vmatpush1.msra.mxu0 0.0
        %748 = vmatprep.subr.mxu0 0.0
        %749 = vmatpush1.msra.mxu0 0.0
        %750 = vmatprep.subr.mxu0 0.0
        %751 = vmatpush1.msra.mxu0 0.0
        %752 = vmatprep.subr.mxu0 0.0
        %753 = vmatpush1.msra.mxu0 0.0
        %754 = vmatprep.subr.mxu0 0.0
        %755 = vmatpush1.msra.mxu0 0.0
        %756 = vmatprep.subr.mxu0 0.0
        %757 = vmatpush1.msra.mxu0 0.0
        %758 = vmatprep.subr.mxu0 0.0
        %759 = vmatpush1.msra.mxu0 0.0
        %760 = vmatprep.subr.mxu0 0.0
        %761 = vmatpush1.msra.mxu0 0.0
        %762 = vmatprep.subr.mxu0 0.0
        %763 = vmatpush1.msra.mxu0 0.0
        %764 = vmatprep.subr.mxu0 0.0
        %765 = vmatpush1.msra.mxu0 0.0
        %766 = vmatprep.subr.mxu0 0.0
        %767 = vmatpush1.msra.mxu0 0.0
        %768 = vmatprep.subr.mxu0 0.0
        %769 = vmatpush1.msra.mxu0 0.0
        %770 = vmatprep.subr.mxu0 0.0
        %771 = vmatpush1.msra.mxu0 0.0
        %772 = vmatprep.subr.mxu0 0.0
        %773 = vmatpush1.msra.mxu0 0.0
        %774 = vmatprep.subr.mxu0 0.0
        %775 = vmatpush1.msra.mxu0 0.0
        %776 = vmatprep.subr.mxu0 0.0
        %777 = vmatpush1.msra.mxu0 0.0
        %778 = vmatprep.subr.mxu0 0.0
        %779 = vmatpush1.msra.mxu0 0.0
        %780 = vmatprep.subr.mxu0 0.0
        %781 = vmatpush1.msra.mxu0 0.0
        %782 = vmatprep.subr.mxu0 0.0
        %783 = vmatpush1.msra.mxu0 0.0
        %784 = vmatprep.subr.mxu0 0.0
        %785 = vmatpush1.msra.mxu0 0.0
        %786 = vmatprep.subr.mxu0 0.0
        %787 = vmatpush1.msra.mxu0 0.0
        %788 = vmatprep.subr.mxu0 0.0
        %789 = vmatpush1.msra.mxu0 0.0
        %790 = vmatprep.subr.mxu0 0.0
        %791 = vmatpush1.msra.mxu0 0.0
        %792 = vmatprep.mubr.f32.mxu0 0.0
        %793 = vmatmul.mubr.f32.gmra.mrb[0].mxu0 %v720
        %v794 = vpop.f32.mrb[0].mxu0
        %v795 = vadd.f32 0.0, %v794
        %v796 = vpop.f32.mrb[0].mxu0
        %v797 = vadd.f32 0.0, %v796
        %798 = vdwg.mxu0
        %v799 = vadd.f32 %v691, %v795
        %v800 = vadd.f32 %v693, %v797
        %801 = vrot.lane.b32.xlu0 %v394, 1
        %v802 = vpop.permute.xlu0 %801
        %803 = vrot.lane.b32.xlu0 %v395, 1
        %v804 = vpop.permute.xlu0 %803
        %vm805 = vcmp.lt.s32.totalorder %v492, 1
        %v806 = vsel %vm805, %v802, %v804
        %v807 = vsel %vm805, %v804, %v802
        %s808 = scalar_lea.vmem %s7, 3
        %v809 = vld [vmem:[%s808] ss:$8 sm:$0x3]
        %v811 = vlaneseq
        %v812 = vshrl.u32 %v811, 7
        %v813 = vsub.s32 0, %v812
        %v814 = vrot.slane %v809, %v813
        %v815 = vlaneseq
        %v816 = vshrl.u32 %v815, 7
        %v817 = vsub.s32 1, %v816
        %v818 = vrot.slane %v809, %v817
        %v821 = vmul.f32 %v807, %v814
        %v822 = vmul.f32 %v806, %v818
        %s823 = scalar_lea.vmem %s5, 24
        %v824 = vld [vmem:[%s823] sm:$0xff]
        %v826 = vsel %vm314, %v824, 0
        %v829 = vsel %vm318, %v821, 0
        %v832 = vsel %vm318, %v822, 0
        %834 = vmatprep.subr.mxu0 %v832
        %835 = vmatpush1.msra.mxu0 %v829
        %836 = vmatprep.subr.mxu0 0.0
        %837 = vmatpush1.msra.mxu0 0.0
        %838 = vmatprep.subr.mxu0 0.0
        %839 = vmatpush1.msra.mxu0 0.0
        %840 = vmatprep.subr.mxu0 0.0
        %841 = vmatpush1.msra.mxu0 0.0
        %842 = vmatprep.subr.mxu0 0.0
        %843 = vmatpush1.msra.mxu0 0.0
        %844 = vmatprep.subr.mxu0 0.0
        %845 = vmatpush1.msra.mxu0 0.0
        %846 = vmatprep.subr.mxu0 0.0
        %847 = vmatpush1.msra.mxu0 0.0
        %848 = vmatprep.subr.mxu0 0.0
        %849 = vmatpush1.msra.mxu0 0.0
        %850 = vmatprep.subr.mxu0 0.0
        %851 = vmatpush1.msra.mxu0 0.0
        %852 = vmatprep.subr.mxu0 0.0
        %853 = vmatpush1.msra.mxu0 0.0
        %854 = vmatprep.subr.mxu0 0.0
        %855 = vmatpush1.msra.mxu0 0.0
        %856 = vmatprep.subr.mxu0 0.0
        %857 = vmatpush1.msra.mxu0 0.0
        %858 = vmatprep.subr.mxu0 0.0
        %859 = vmatpush1.msra.mxu0 0.0
        %860 = vmatprep.subr.mxu0 0.0
        %861 = vmatpush1.msra.mxu0 0.0
        %862 = vmatprep.subr.mxu0 0.0
        %863 = vmatpush1.msra.mxu0 0.0
        %864 = vmatprep.subr.mxu0 0.0
        %865 = vmatpush1.msra.mxu0 0.0
        %866 = vmatprep.subr.mxu0 0.0
        %867 = vmatpush1.msra.mxu0 0.0
        %868 = vmatprep.subr.mxu0 0.0
        %869 = vmatpush1.msra.mxu0 0.0
        %870 = vmatprep.subr.mxu0 0.0
        %871 = vmatpush1.msra.mxu0 0.0
        %872 = vmatprep.subr.mxu0 0.0
        %873 = vmatpush1.msra.mxu0 0.0
        %874 = vmatprep.subr.mxu0 0.0
        %875 = vmatpush1.msra.mxu0 0.0
        %876 = vmatprep.subr.mxu0 0.0
        %877 = vmatpush1.msra.mxu0 0.0
        %878 = vmatprep.subr.mxu0 0.0
        %879 = vmatpush1.msra.mxu0 0.0
        %880 = vmatprep.subr.mxu0 0.0
        %881 = vmatpush1.msra.mxu0 0.0
        %882 = vmatprep.subr.mxu0 0.0
        %883 = vmatpush1.msra.mxu0 0.0
        %884 = vmatprep.subr.mxu0 0.0
        %885 = vmatpush1.msra.mxu0 0.0
        %886 = vmatprep.subr.mxu0 0.0
        %887 = vmatpush1.msra.mxu0 0.0
        %888 = vmatprep.subr.mxu0 0.0
        %889 = vmatpush1.msra.mxu0 0.0
        %890 = vmatprep.subr.mxu0 0.0
        %891 = vmatpush1.msra.mxu0 0.0
        %892 = vmatprep.subr.mxu0 0.0
        %893 = vmatpush1.msra.mxu0 0.0
        %894 = vmatprep.subr.mxu0 0.0
        %895 = vmatpush1.msra.mxu0 0.0
        %896 = vmatprep.subr.mxu0 0.0
        %897 = vmatpush1.msra.mxu0 0.0
        %898 = vmatprep.mubr.f32.mxu0 0.0
        %899 = vmatmul.mubr.f32.gmra.mrb[0].mxu0 %v826
        %v900 = vpop.f32.mrb[0].mxu0
        %v901 = vadd.f32 0.0, %v900
        %v902 = vpop.f32.mrb[0].mxu0
        %v903 = vadd.f32 0.0, %v902
        %904 = vdwg.mxu0
        %v905 = vadd.f32 %v799, %v901
        %v906 = vadd.f32 %v800, %v903
        %s907 = scalar_lea.vmem %s5, 32
        %v908 = vld [vmem:[%s907] sm:$0xff]
        %v910 = vsel %vm314, %v908, 0
        %912 = vmatprep.subr.mxu0 %v410
        %913 = vmatpush1.msra.mxu0 %v407
        %914 = vmatprep.subr.mxu0 0.0
        %915 = vmatpush1.msra.mxu0 0.0
        %916 = vmatprep.subr.mxu0 0.0
        %917 = vmatpush1.msra.mxu0 0.0
        %918 = vmatprep.subr.mxu0 0.0
        %919 = vmatpush1.msra.mxu0 0.0
        %920 = vmatprep.subr.mxu0 0.0
        %921 = vmatpush1.msra.mxu0 0.0
        %922 = vmatprep.subr.mxu0 0.0
        %923 = vmatpush1.msra.mxu0 0.0
        %924 = vmatprep.subr.mxu0 0.0
        %925 = vmatpush1.msra.mxu0 0.0
        %926 = vmatprep.subr.mxu0 0.0
        %927 = vmatpush1.msra.mxu0 0.0
        %928 = vmatprep.subr.mxu0 0.0
        %929 = vmatpush1.msra.mxu0 0.0
        %930 = vmatprep.subr.mxu0 0.0
        %931 = vmatpush1.msra.mxu0 0.0
        %932 = vmatprep.subr.mxu0 0.0
        %933 = vmatpush1.msra.mxu0 0.0
        %934 = vmatprep.subr.mxu0 0.0
        %935 = vmatpush1.msra.mxu0 0.0
        %936 = vmatprep.subr.mxu0 0.0
        %937 = vmatpush1.msra.mxu0 0.0
        %938 = vmatprep.subr.mxu0 0.0
        %939 = vmatpush1.msra.mxu0 0.0
        %940 = vmatprep.subr.mxu0 0.0
        %941 = vmatpush1.msra.mxu0 0.0
        %942 = vmatprep.subr.mxu0 0.0
        %943 = vmatpush1.msra.mxu0 0.0
        %944 = vmatprep.subr.mxu0 0.0
        %945 = vmatpush1.msra.mxu0 0.0
        %946 = vmatprep.subr.mxu0 0.0
        %947 = vmatpush1.msra.mxu0 0.0
        %948 = vmatprep.subr.mxu0 0.0
        %949 = vmatpush1.msra.mxu0 0.0
        %950 = vmatprep.subr.mxu0 0.0
        %951 = vmatpush1.msra.mxu0 0.0
        %952 = vmatprep.subr.mxu0 0.0
        %953 = vmatpush1.msra.mxu0 0.0
        %954 = vmatprep.subr.mxu0 0.0
        %955 = vmatpush1.msra.mxu0 0.0
        %956 = vmatprep.subr.mxu0 0.0
        %957 = vmatpush1.msra.mxu0 0.0
        %958 = vmatprep.subr.mxu0 0.0
        %959 = vmatpush1.msra.mxu0 0.0
        %960 = vmatprep.subr.mxu0 0.0
        %961 = vmatpush1.msra.mxu0 0.0
        %962 = vmatprep.subr.mxu0 0.0
        %963 = vmatpush1.msra.mxu0 0.0
        %964 = vmatprep.subr.mxu0 0.0
        %965 = vmatpush1.msra.mxu0 0.0
        %966 = vmatprep.subr.mxu0 0.0
        %967 = vmatpush1.msra.mxu0 0.0
        %968 = vmatprep.subr.mxu0 0.0
        %969 = vmatpush1.msra.mxu0 0.0
        %970 = vmatprep.subr.mxu0 0.0
        %971 = vmatpush1.msra.mxu0 0.0
        %972 = vmatprep.subr.mxu0 0.0
        %973 = vmatpush1.msra.mxu0 0.0
        %974 = vmatprep.subr.mxu0 0.0
        %975 = vmatpush1.msra.mxu0 0.0
        %976 = vmatprep.mubr.f32.mxu0 0.0
        %977 = vmatmul.mubr.f32.gmra.mrb[0].mxu0 %v910
        %v978 = vpop.f32.mrb[0].mxu0
        %v979 = vadd.f32 0.0, %v978
        %v980 = vpop.f32.mrb[0].mxu0
        %v981 = vadd.f32 0.0, %v980
        %982 = vdwg.mxu0
        %v983 = vadd.f32 %v905, %v979
        %v984 = vadd.f32 %v906, %v981
        %985 = vrot.lane.b32.xlu0 %v394, 127
        %v986 = vpop.permute.xlu0 %985
        %987 = vrot.lane.b32.xlu0 %v395, 127
        %v988 = vpop.permute.xlu0 %987
        %vm989 = vcmp.lt.s32.totalorder %v492, 127
        %v990 = vsel %vm989, %v986, %v988
        %v991 = vsel %vm989, %v988, %v986
        %s992 = scalar_lea.vmem %s7, 5
        %v993 = vld [vmem:[%s992] ss:$8 sm:$0x3]
        %v995 = vlaneseq
        %v996 = vshrl.u32 %v995, 7
        %v997 = vsub.s32 0, %v996
        %v998 = vrot.slane %v993, %v997
        %v999 = vlaneseq
        %v1000 = vshrl.u32 %v999, 7
        %v1001 = vsub.s32 1, %v1000
        %v1002 = vrot.slane %v993, %v1001
        %v1005 = vmul.f32 %v990, %v998
        %v1006 = vmul.f32 %v991, %v1002
        %s1007 = scalar_lea.vmem %s5, 40
        %v1008 = vld [vmem:[%s1007] sm:$0xff]
        %v1010 = vsel %vm314, %v1008, 0
        %v1013 = vsel %vm318, %v1005, 0
        %v1016 = vsel %vm318, %v1006, 0
        %1018 = vmatprep.subr.mxu0 %v1016
        %1019 = vmatpush1.msra.mxu0 %v1013
        %1020 = vmatprep.subr.mxu0 0.0
        %1021 = vmatpush1.msra.mxu0 0.0
        %1022 = vmatprep.subr.mxu0 0.0
        %1023 = vmatpush1.msra.mxu0 0.0
        %1024 = vmatprep.subr.mxu0 0.0
        %1025 = vmatpush1.msra.mxu0 0.0
        %1026 = vmatprep.subr.mxu0 0.0
        %1027 = vmatpush1.msra.mxu0 0.0
        %1028 = vmatprep.subr.mxu0 0.0
        %1029 = vmatpush1.msra.mxu0 0.0
        %1030 = vmatprep.subr.mxu0 0.0
        %1031 = vmatpush1.msra.mxu0 0.0
        %1032 = vmatprep.subr.mxu0 0.0
        %1033 = vmatpush1.msra.mxu0 0.0
        %1034 = vmatprep.subr.mxu0 0.0
        %1035 = vmatpush1.msra.mxu0 0.0
        %1036 = vmatprep.subr.mxu0 0.0
        %1037 = vmatpush1.msra.mxu0 0.0
        %1038 = vmatprep.subr.mxu0 0.0
        %1039 = vmatpush1.msra.mxu0 0.0
        %1040 = vmatprep.subr.mxu0 0.0
        %1041 = vmatpush1.msra.mxu0 0.0
        %1042 = vmatprep.subr.mxu0 0.0
        %1043 = vmatpush1.msra.mxu0 0.0
        %1044 = vmatprep.subr.mxu0 0.0
        %1045 = vmatpush1.msra.mxu0 0.0
        %1046 = vmatprep.subr.mxu0 0.0
        %1047 = vmatpush1.msra.mxu0 0.0
        %1048 = vmatprep.subr.mxu0 0.0
        %1049 = vmatpush1.msra.mxu0 0.0
        %1050 = vmatprep.subr.mxu0 0.0
        %1051 = vmatpush1.msra.mxu0 0.0
        %1052 = vmatprep.subr.mxu0 0.0
        %1053 = vmatpush1.msra.mxu0 0.0
        %1054 = vmatprep.subr.mxu0 0.0
        %1055 = vmatpush1.msra.mxu0 0.0
        %1056 = vmatprep.subr.mxu0 0.0
        %1057 = vmatpush1.msra.mxu0 0.0
        %1058 = vmatprep.subr.mxu0 0.0
        %1059 = vmatpush1.msra.mxu0 0.0
        %1060 = vmatprep.subr.mxu0 0.0
        %1061 = vmatpush1.msra.mxu0 0.0
        %1062 = vmatprep.subr.mxu0 0.0
        %1063 = vmatpush1.msra.mxu0 0.0
        %1064 = vmatprep.subr.mxu0 0.0
        %1065 = vmatpush1.msra.mxu0 0.0
        %1066 = vmatprep.subr.mxu0 0.0
        %1067 = vmatpush1.msra.mxu0 0.0
        %1068 = vmatprep.subr.mxu0 0.0
        %1069 = vmatpush1.msra.mxu0 0.0
        %1070 = vmatprep.subr.mxu0 0.0
        %1071 = vmatpush1.msra.mxu0 0.0
        %1072 = vmatprep.subr.mxu0 0.0
        %1073 = vmatpush1.msra.mxu0 0.0
        %1074 = vmatprep.subr.mxu0 0.0
        %1075 = vmatpush1.msra.mxu0 0.0
        %1076 = vmatprep.subr.mxu0 0.0
        %1077 = vmatpush1.msra.mxu0 0.0
        %1078 = vmatprep.subr.mxu0 0.0
        %1079 = vmatpush1.msra.mxu0 0.0
        %1080 = vmatprep.subr.mxu0 0.0
        %1081 = vmatpush1.msra.mxu0 0.0
        %1082 = vmatprep.mubr.f32.mxu0 0.0
        %1083 = vmatmul.mubr.f32.gmra.mrb[0].mxu0 %v1010
        %v1084 = vpop.f32.mrb[0].mxu0
        %v1085 = vadd.f32 0.0, %v1084
        %v1086 = vpop.f32.mrb[0].mxu0
        %v1087 = vadd.f32 0.0, %v1086
        %1088 = vdwg.mxu0
        %v1089 = vadd.f32 %v983, %v1085
        %v1090 = vadd.f32 %v984, %v1087
        %1091 = vrot.lane.b32.xlu0 %v394, 113
        %v1092 = vpop.permute.xlu0 %1091
        %1093 = vrot.lane.b32.xlu0 %v395, 113
        %v1094 = vpop.permute.xlu0 %1093
        %vm1095 = vcmp.lt.s32.totalorder %v492, 113
        %v1096 = vsel %vm1095, %v1092, %v1094
        %v1097 = vsel %vm1095, %v1094, %v1092
        %s1098 = scalar_lea.vmem %s7, 6
        %v1099 = vld [vmem:[%s1098] ss:$8 sm:$0x3]
        %v1101 = vlaneseq
        %v1102 = vshrl.u32 %v1101, 7
        %v1103 = vsub.s32 0, %v1102
        %v1104 = vrot.slane %v1099, %v1103
        %v1105 = vlaneseq
        %v1106 = vshrl.u32 %v1105, 7
        %v1107 = vsub.s32 1, %v1106
        %v1108 = vrot.slane %v1099, %v1107
        %v1111 = vmul.f32 %v1096, %v1104
        %v1112 = vmul.f32 %v1097, %v1108
        %s1113 = scalar_lea.vmem %s5, 48
        %v1114 = vld [vmem:[%s1113] sm:$0xff]
        %v1116 = vsel %vm314, %v1114, 0
        %v1119 = vsel %vm318, %v1111, 0
        %v1122 = vsel %vm318, %v1112, 0
        %1124 = vmatprep.subr.mxu0 %v1122
        %1125 = vmatpush1.msra.mxu0 %v1119
        %1126 = vmatprep.subr.mxu0 0.0
        %1127 = vmatpush1.msra.mxu0 0.0
        %1128 = vmatprep.subr.mxu0 0.0
        %1129 = vmatpush1.msra.mxu0 0.0
        %1130 = vmatprep.subr.mxu0 0.0
        %1131 = vmatpush1.msra.mxu0 0.0
        %1132 = vmatprep.subr.mxu0 0.0
        %1133 = vmatpush1.msra.mxu0 0.0
        %1134 = vmatprep.subr.mxu0 0.0
        %1135 = vmatpush1.msra.mxu0 0.0
        %1136 = vmatprep.subr.mxu0 0.0
        %1137 = vmatpush1.msra.mxu0 0.0
        %1138 = vmatprep.subr.mxu0 0.0
        %1139 = vmatpush1.msra.mxu0 0.0
        %1140 = vmatprep.subr.mxu0 0.0
        %1141 = vmatpush1.msra.mxu0 0.0
        %1142 = vmatprep.subr.mxu0 0.0
        %1143 = vmatpush1.msra.mxu0 0.0
        %1144 = vmatprep.subr.mxu0 0.0
        %1145 = vmatpush1.msra.mxu0 0.0
        %1146 = vmatprep.subr.mxu0 0.0
        %1147 = vmatpush1.msra.mxu0 0.0
        %1148 = vmatprep.subr.mxu0 0.0
        %1149 = vmatpush1.msra.mxu0 0.0
        %1150 = vmatprep.subr.mxu0 0.0
        %1151 = vmatpush1.msra.mxu0 0.0
        %1152 = vmatprep.subr.mxu0 0.0
        %1153 = vmatpush1.msra.mxu0 0.0
        %1154 = vmatprep.subr.mxu0 0.0
        %1155 = vmatpush1.msra.mxu0 0.0
        %1156 = vmatprep.subr.mxu0 0.0
        %1157 = vmatpush1.msra.mxu0 0.0
        %1158 = vmatprep.subr.mxu0 0.0
        %1159 = vmatpush1.msra.mxu0 0.0
        %1160 = vmatprep.subr.mxu0 0.0
        %1161 = vmatpush1.msra.mxu0 0.0
        %1162 = vmatprep.subr.mxu0 0.0
        %1163 = vmatpush1.msra.mxu0 0.0
        %1164 = vmatprep.subr.mxu0 0.0
        %1165 = vmatpush1.msra.mxu0 0.0
        %1166 = vmatprep.subr.mxu0 0.0
        %1167 = vmatpush1.msra.mxu0 0.0
        %1168 = vmatprep.subr.mxu0 0.0
        %1169 = vmatpush1.msra.mxu0 0.0
        %1170 = vmatprep.subr.mxu0 0.0
        %1171 = vmatpush1.msra.mxu0 0.0
        %1172 = vmatprep.subr.mxu0 0.0
        %1173 = vmatpush1.msra.mxu0 0.0
        %1174 = vmatprep.subr.mxu0 0.0
        %1175 = vmatpush1.msra.mxu0 0.0
        %1176 = vmatprep.subr.mxu0 0.0
        %1177 = vmatpush1.msra.mxu0 0.0
        %1178 = vmatprep.subr.mxu0 0.0
        %1179 = vmatpush1.msra.mxu0 0.0
        %1180 = vmatprep.subr.mxu0 0.0
        %1181 = vmatpush1.msra.mxu0 0.0
        %1182 = vmatprep.subr.mxu0 0.0
        %1183 = vmatpush1.msra.mxu0 0.0
        %1184 = vmatprep.subr.mxu0 0.0
        %1185 = vmatpush1.msra.mxu0 0.0
        %1186 = vmatprep.subr.mxu0 0.0
        %1187 = vmatpush1.msra.mxu0 0.0
        %1188 = vmatprep.mubr.f32.mxu0 0.0
        %1189 = vmatmul.mubr.f32.gmra.mrb[0].mxu0 %v1116
        %v1190 = vpop.f32.mrb[0].mxu0
        %v1191 = vadd.f32 0.0, %v1190
        %v1192 = vpop.f32.mrb[0].mxu0
        %v1193 = vadd.f32 0.0, %v1192
        %1194 = vdwg.mxu0
        %v1195 = vadd.f32 %v1089, %v1191
        %v1196 = vadd.f32 %v1090, %v1193
        %1197 = vrot.lane.b32.xlu0 %v394, 112
        %v1198 = vpop.permute.xlu0 %1197
        %1199 = vrot.lane.b32.xlu0 %v395, 112
        %v1200 = vpop.permute.xlu0 %1199
        %vm1201 = vcmp.lt.s32.totalorder %v492, 112
        %v1202 = vsel %vm1201, %v1198, %v1200
        %v1203 = vsel %vm1201, %v1200, %v1198
        %s1204 = scalar_lea.vmem %s7, 7
        %v1205 = vld [vmem:[%s1204] ss:$8 sm:$0x3]
        %v1207 = vlaneseq
        %v1208 = vshrl.u32 %v1207, 7
        %v1209 = vsub.s32 0, %v1208
        %v1210 = vrot.slane %v1205, %v1209
        %v1211 = vlaneseq
        %v1212 = vshrl.u32 %v1211, 7
        %v1213 = vsub.s32 1, %v1212
        %v1214 = vrot.slane %v1205, %v1213
        %v1217 = vmul.f32 %v1202, %v1210
        %v1218 = vmul.f32 %v1203, %v1214
        %s1219 = scalar_lea.vmem %s5, 56
        %v1220 = vld [vmem:[%s1219] sm:$0xff]
        %v1222 = vsel %vm314, %v1220, 0
        %v1225 = vsel %vm318, %v1217, 0
        %v1228 = vsel %vm318, %v1218, 0
        %1230 = vmatprep.subr.mxu0 %v1228
        %1231 = vmatpush1.msra.mxu0 %v1225
        %1232 = vmatprep.subr.mxu0 0.0
        %1233 = vmatpush1.msra.mxu0 0.0
        %1234 = vmatprep.subr.mxu0 0.0
        %1235 = vmatpush1.msra.mxu0 0.0
        %1236 = vmatprep.subr.mxu0 0.0
        %1237 = vmatpush1.msra.mxu0 0.0
        %1238 = vmatprep.subr.mxu0 0.0
        %1239 = vmatpush1.msra.mxu0 0.0
        %1240 = vmatprep.subr.mxu0 0.0
        %1241 = vmatpush1.msra.mxu0 0.0
        %1242 = vmatprep.subr.mxu0 0.0
        %1243 = vmatpush1.msra.mxu0 0.0
        %1244 = vmatprep.subr.mxu0 0.0
        %1245 = vmatpush1.msra.mxu0 0.0
        %1246 = vmatprep.subr.mxu0 0.0
        %1247 = vmatpush1.msra.mxu0 0.0
        %1248 = vmatprep.subr.mxu0 0.0
        %1249 = vmatpush1.msra.mxu0 0.0
        %1250 = vmatprep.subr.mxu0 0.0
        %1251 = vmatpush1.msra.mxu0 0.0
        %1252 = vmatprep.subr.mxu0 0.0
        %1253 = vmatpush1.msra.mxu0 0.0
        %1254 = vmatprep.subr.mxu0 0.0
        %1255 = vmatpush1.msra.mxu0 0.0
        %1256 = vmatprep.subr.mxu0 0.0
        %1257 = vmatpush1.msra.mxu0 0.0
        %1258 = vmatprep.subr.mxu0 0.0
        %1259 = vmatpush1.msra.mxu0 0.0
        %1260 = vmatprep.subr.mxu0 0.0
        %1261 = vmatpush1.msra.mxu0 0.0
        %1262 = vmatprep.subr.mxu0 0.0
        %1263 = vmatpush1.msra.mxu0 0.0
        %1264 = vmatprep.subr.mxu0 0.0
        %1265 = vmatpush1.msra.mxu0 0.0
        %1266 = vmatprep.subr.mxu0 0.0
        %1267 = vmatpush1.msra.mxu0 0.0
        %1268 = vmatprep.subr.mxu0 0.0
        %1269 = vmatpush1.msra.mxu0 0.0
        %1270 = vmatprep.subr.mxu0 0.0
        %1271 = vmatpush1.msra.mxu0 0.0
        %1272 = vmatprep.subr.mxu0 0.0
        %1273 = vmatpush1.msra.mxu0 0.0
        %1274 = vmatprep.subr.mxu0 0.0
        %1275 = vmatpush1.msra.mxu0 0.0
        %1276 = vmatprep.subr.mxu0 0.0
        %1277 = vmatpush1.msra.mxu0 0.0
        %1278 = vmatprep.subr.mxu0 0.0
        %1279 = vmatpush1.msra.mxu0 0.0
        %1280 = vmatprep.subr.mxu0 0.0
        %1281 = vmatpush1.msra.mxu0 0.0
        %1282 = vmatprep.subr.mxu0 0.0
        %1283 = vmatpush1.msra.mxu0 0.0
        %1284 = vmatprep.subr.mxu0 0.0
        %1285 = vmatpush1.msra.mxu0 0.0
        %1286 = vmatprep.subr.mxu0 0.0
        %1287 = vmatpush1.msra.mxu0 0.0
        %1288 = vmatprep.subr.mxu0 0.0
        %1289 = vmatpush1.msra.mxu0 0.0
        %1290 = vmatprep.subr.mxu0 0.0
        %1291 = vmatpush1.msra.mxu0 0.0
        %1292 = vmatprep.subr.mxu0 0.0
        %1293 = vmatpush1.msra.mxu0 0.0
        %1294 = vmatprep.mubr.f32.mxu0 0.0
        %1295 = vmatmul.mubr.f32.gmra.mrb[0].mxu0 %v1222
        %v1296 = vpop.f32.mrb[0].mxu0
        %v1297 = vadd.f32 0.0, %v1296
        %v1298 = vpop.f32.mrb[0].mxu0
        %v1299 = vadd.f32 0.0, %v1298
        %1300 = vdwg.mxu0
        %v1301 = vadd.f32 %v1195, %v1297
        %v1302 = vadd.f32 %v1196, %v1299
        %1303 = vrot.lane.b32.xlu0 %v394, 111
        %v1304 = vpop.permute.xlu0 %1303
        %1305 = vrot.lane.b32.xlu0 %v395, 111
        %v1306 = vpop.permute.xlu0 %1305
        %vm1307 = vcmp.lt.s32.totalorder %v492, 111
        %v1308 = vsel %vm1307, %v1304, %v1306
        %v1309 = vsel %vm1307, %v1306, %v1304
        %s1310 = scalar_lea.vmem %s7, 16
        %v1311 = vld [vmem:[%s1310] ss:$8 sm:$0x3]
        %v1313 = vlaneseq
        %v1314 = vshrl.u32 %v1313, 7
        %v1315 = vsub.s32 0, %v1314
        %v1316 = vrot.slane %v1311, %v1315
        %v1317 = vlaneseq
        %v1318 = vshrl.u32 %v1317, 7
        %v1319 = vsub.s32 1, %v1318
        %v1320 = vrot.slane %v1311, %v1319
        %v1323 = vmul.f32 %v1308, %v1316
        %v1324 = vmul.f32 %v1309, %v1320
        %s1325 = scalar_lea.vmem %s5, 64
        %v1326 = vld [vmem:[%s1325] sm:$0xff]
        %v1328 = vsel %vm314, %v1326, 0
        %v1331 = vsel %vm318, %v1323, 0
        %v1334 = vsel %vm318, %v1324, 0
        %1336 = vmatprep.subr.mxu0 %v1334
        %1337 = vmatpush1.msra.mxu0 %v1331
        %1338 = vmatprep.subr.mxu0 0.0
        %1339 = vmatpush1.msra.mxu0 0.0
        %1340 = vmatprep.subr.mxu0 0.0
        %1341 = vmatpush1.msra.mxu0 0.0
        %1342 = vmatprep.subr.mxu0 0.0
        %1343 = vmatpush1.msra.mxu0 0.0
        %1344 = vmatprep.subr.mxu0 0.0
        %1345 = vmatpush1.msra.mxu0 0.0
        %1346 = vmatprep.subr.mxu0 0.0
        %1347 = vmatpush1.msra.mxu0 0.0
        %1348 = vmatprep.subr.mxu0 0.0
        %1349 = vmatpush1.msra.mxu0 0.0
        %1350 = vmatprep.subr.mxu0 0.0
        %1351 = vmatpush1.msra.mxu0 0.0
        %1352 = vmatprep.subr.mxu0 0.0
        %1353 = vmatpush1.msra.mxu0 0.0
        %1354 = vmatprep.subr.mxu0 0.0
        %1355 = vmatpush1.msra.mxu0 0.0
        %1356 = vmatprep.subr.mxu0 0.0
        %1357 = vmatpush1.msra.mxu0 0.0
        %1358 = vmatprep.subr.mxu0 0.0
        %1359 = vmatpush1.msra.mxu0 0.0
        %1360 = vmatprep.subr.mxu0 0.0
        %1361 = vmatpush1.msra.mxu0 0.0
        %1362 = vmatprep.subr.mxu0 0.0
        %1363 = vmatpush1.msra.mxu0 0.0
        %1364 = vmatprep.subr.mxu0 0.0
        %1365 = vmatpush1.msra.mxu0 0.0
        %1366 = vmatprep.subr.mxu0 0.0
        %1367 = vmatpush1.msra.mxu0 0.0
        %1368 = vmatprep.subr.mxu0 0.0
        %1369 = vmatpush1.msra.mxu0 0.0
        %1370 = vmatprep.subr.mxu0 0.0
        %1371 = vmatpush1.msra.mxu0 0.0
        %1372 = vmatprep.subr.mxu0 0.0
        %1373 = vmatpush1.msra.mxu0 0.0
        %1374 = vmatprep.subr.mxu0 0.0
        %1375 = vmatpush1.msra.mxu0 0.0
        %1376 = vmatprep.subr.mxu0 0.0
        %1377 = vmatpush1.msra.mxu0 0.0
        %1378 = vmatprep.subr.mxu0 0.0
        %1379 = vmatpush1.msra.mxu0 0.0
        %1380 = vmatprep.subr.mxu0 0.0
        %1381 = vmatpush1.msra.mxu0 0.0
        %1382 = vmatprep.subr.mxu0 0.0
        %1383 = vmatpush1.msra.mxu0 0.0
        %1384 = vmatprep.subr.mxu0 0.0
        %1385 = vmatpush1.msra.mxu0 0.0
        %1386 = vmatprep.subr.mxu0 0.0
        %1387 = vmatpush1.msra.mxu0 0.0
        %1388 = vmatprep.subr.mxu0 0.0
        %1389 = vmatpush1.msra.mxu0 0.0
        %1390 = vmatprep.subr.mxu0 0.0
        %1391 = vmatpush1.msra.mxu0 0.0
        %1392 = vmatprep.subr.mxu0 0.0
        %1393 = vmatpush1.msra.mxu0 0.0
        %1394 = vmatprep.subr.mxu0 0.0
        %1395 = vmatpush1.msra.mxu0 0.0
        %1396 = vmatprep.subr.mxu0 0.0
        %1397 = vmatpush1.msra.mxu0 0.0
        %1398 = vmatprep.subr.mxu0 0.0
        %1399 = vmatpush1.msra.mxu0 0.0
        %1400 = vmatprep.mubr.f32.mxu0 0.0
        %1401 = vmatmul.mubr.f32.gmra.mrb[0].mxu0 %v1328
        %v1402 = vpop.f32.mrb[0].mxu0
        %v1403 = vadd.f32 0.0, %v1402
        %v1404 = vpop.f32.mrb[0].mxu0
        %v1405 = vadd.f32 0.0, %v1404
        %1406 = vdwg.mxu0
        %v1407 = vadd.f32 %v1301, %v1403
        %v1408 = vadd.f32 %v1302, %v1405
        %v1409 = vld [vmem:[%s6] sm:$0xff]
        %1411 = vset.pattern.permute.xlu0 0
        %1412 = vperm.xlu0 %1411, %v1409
        %v1413 = vpop.permute.xlu0 %1412
        %v1415 = vadd.f32 %v1407, %v1413
        %v1416 = vadd.f32 %v1408, %v1413
        %v1417 = vmax.f32 %v1415, 0.0
        %v1418 = vmax.f32 %v1416, 0.0
        %1419 = vst [vmem:[%s298 + $0x10] sm:$0xff] %v1417
        %1420 = vst [vmem:[%s298 + $0x18] sm:$0xff] %v1418
        %s1421 = sand.u32 %s203, 1
        %s1422 = scalar_lea.sflag [#allocation3], %s1421
        %s1423 = sand.u32 %s203, 1
        %s1424 = smul.addr %s1423, 32
        %s1425 = scalar_lea.vmem [#allocation2], %s1424
        // Predicated region
        $region53: #{tpu_custom_call.1} parent=51 // pred_check
          %p1426 = pneg %p213
        $region54: #{tpu_custom_call.1} parent=51 // pred_check_branch
          %1428 = sbr.rel (%p1426) target = $region56
        $region55: #{tpu_custom_call.1} parent=51 // pred_region
          %s1430 = ssub.s32 512, 512
          %1431 = vsyncadd %s1422, %s1430
          %s1432 = smul.addr %s22, 4
          %s1433 = smul.addr %s1432, 128
          %s1434 = scalar_lea.hbm %s8, %s1433
          %s1435 = sshll.u32 %s1425, 4
          %s1436 = int_to_ptr.vmem [resolvable:$true] %s1435
          %1441 = dma.vmem_to_hbm [thread:$0]  %s1436, 512, %s1434, %s1422, 256, 256, 16
        $region56: #{tpu_custom_call.1} parent=51 // pred_fallthru
          _
      $region52: #{tpu_custom_call.1} parent=5 // pred_fallthru
        _
      %p1442 = scmp.le.s32.totalorder 2, %s17
      // Predicated region
      $region57: #{tpu_custom_call.1} parent=5 // pred_check
        %p1443 = pneg %p1442
      $region58: #{tpu_custom_call.1} parent=5 // pred_check_branch
        %1445 = sbr.rel (%p1443) target = $region60
      $region59: #{tpu_custom_call.1} parent=5 // pred_region
        %s1446 = ssub.s32 %s17, 2
        // Predicated region
        $region61: #{tpu_custom_call.1} parent=59 // pred_check
          %p1447 = pneg %p219
        $region62: #{tpu_custom_call.1} parent=59 // pred_check_branch
          %1449 = sbr.rel (%p1447) target = $region64
        $region63: #{tpu_custom_call.1} parent=59 // pred_region
          %s1450 = sand.u32 %s204, 1
          %s1451 = scalar_lea.sflag [#allocation3], %s1450
          %s1452 = sand.u32 %s204, 1
          %s1453 = smul.addr %s1452, 32
          %s1454 = scalar_lea.vmem [#allocation2], %s1453
          %1455 = dma.done %s1451, 512
        $region64: #{tpu_custom_call.1} parent=59 // pred_fallthru
          _
      $region60: #{tpu_custom_call.1} parent=5 // pred_fallthru
        _
    $region6: #{tpu_custom_call.1} parent=1 // loop_footer
      %s21 = sadd.s32 1, %s17
    $region7: #{tpu_custom_call.1} parent=1 // loop_footer_branch
      %16 = sbr.rel target = $region3
    $region8: #{tpu_custom_call.1} parent=1 // loop_exit
      _
    %1456 = vsyncpa [#allocation3], 1
    %s1457 = scalar_lea.sflag [#allocation3], 1
    %1458 = vsyncpa %s1457, 1

</llo_original>
